<compile_context>
chip_gen: v6e
topology: v6e:2x2x1
jax: 0.10.0
libtpu: 0.0.40
codegen_flags: <defaults>
</compile_context>

<pallas_src>
import functools

import jax
import jax.numpy as jnp
from jax.experimental import pallas as pl
from jax.experimental.pallas import tpu as pltpu


def _ffm_kernel(fsp_ref, fcp_ref, wsp_ref, wcp_ref, shift_ref, w1_ref, w2_ref,
                out_ref, *scratch, inv_hw, use_cache, cache_dtype):
    if use_cache:
        cache_ref, sum_ref, gain_ref = scratch
    else:
        sum_ref, gain_ref = scratch

    phase = pl.program_id(1)
    hw = pl.program_id(2)
    last_hw = pl.num_programs(2) - 1

    def compute_feat():
        # In-kernel bf16 cast of the activations (hidden under the input DMA);
        # BN scale is pre-folded into wsp/wcp (bf16); accumulate in f32.
        a = fsp_ref[0].astype(jnp.bfloat16)
        b = fcp_ref[0].astype(jnp.bfloat16)
        pre = (jnp.dot(a, wsp_ref[...], preferred_element_type=jnp.float32)
               + jnp.dot(b, wcp_ref[...], preferred_element_type=jnp.float32))
        return jnp.maximum(pre + shift_ref[...], 0.0)          # (T, Cout) f32

    # ---- phase 0: compute feat per tile, cache it, accumulate the per-channel
    # ---- global sum; on the last tile run the tiny attention branch once. ----
    @pl.when(phase == 0)
    def _phase0():
        @pl.when(hw == 0)
        def _():
            sum_ref[...] = jnp.zeros_like(sum_ref)

        feat = compute_feat()
        sum_ref[...] += jnp.sum(feat, axis=0, keepdims=True)
        if use_cache:
            cache_ref[hw] = feat.astype(cache_dtype)

        @pl.when(hw == last_hw)
        def _():
            atten = sum_ref[...] * inv_hw                       # global avg pool, (1, Cout)
            a = jnp.dot(atten, w1_ref[...], preferred_element_type=jnp.float32)
            a = jnp.maximum(a, 0.0)
            a = jnp.dot(a, w2_ref[...], preferred_element_type=jnp.float32)
            # feat*atten + feat == feat * (1 + atten): fold the +1 here, once.
            gain_ref[...] = 1.0 + jax.nn.sigmoid(a)

    # ---- phase 1: read feat from the VMEM cache (or recompute on the fallback
    # ---- path) and apply the gain.  No input DMAs happen here when caching. ----
    @pl.when(phase == 1)
    def _phase1():
        if use_cache:
            feat = cache_ref[hw].astype(jnp.float32)
        else:
            feat = compute_feat()
        out_ref[0] = (feat * gain_ref[...]).astype(out_ref.dtype)


def feature_fusion(fsp, fcp, wsp, wcp, scale, shift, w1, w2, *,
                   hw_tile=512, out_dtype=jnp.float32):
    """fsp/fcp: (N, HW, Csp/Ccp) float32.  Returns (N, HW, Cout) in out_dtype."""
    N, HW, Csp = fsp.shape
    Ccp = fcp.shape[-1]
    Cout = wsp.shape[-1]
    Cmid = w1.shape[-1]

    hw_tile = min(hw_tile, HW)
    assert HW % hw_tile == 0, "HW must be divisible by hw_tile"
    assert hw_tile % 16 == 0, "hw_tile must be a multiple of 16 (bf16 sublane packing)"
    n_hw = HW // hw_tile

    # ---------------- VMEM plan: feat cache + pipelined tiles ----------------
    out_itemsize = jnp.dtype(out_dtype).itemsize
    act_tile_bytes = 2 * hw_tile * (Csp + Ccp) * 4          # double-buffered f32 inputs
    out_tile_bytes = 2 * hw_tile * Cout * out_itemsize      # double-buffered output tile
    weight_bytes = 2 * ((Csp + Ccp) * Cout * 2 + Cout * 4   # bf16 conv w + f32 shift
                        + Cout * Cmid * 4 + Cmid * Cout * 4)
    base_bytes = act_tile_bytes + out_tile_bytes + weight_bytes + 4 * Cout * 4
    budget = 48 * 1024 * 1024                                # safe on v5e/v6e/v7x
    use_cache, cache_dtype, needed = False, jnp.float32, base_bytes
    for cd in (jnp.float32, jnp.bfloat16):                   # prefer f32 cache (exactness)
        cache_bytes = HW * Cout * jnp.dtype(cd).itemsize
        if base_bytes + cache_bytes <= budget:
            use_cache, cache_dtype, needed = True, cd, base_bytes + cache_bytes
            break
    vmem_limit = int(min(max(needed + 8 * 1024 * 1024, 32 * 1024 * 1024),
                         64 * 1024 * 1024))

    # Fold the per-output-channel BN scale into the conv weight columns (one-time
    # transform on tiny constants), cast weights to bf16 for the MXU.  Activations
    # stay f32 here — the bf16 cast happens in-kernel.
    wsp_f = (wsp * scale).astype(jnp.bfloat16)
    wcp_f = (wcp * scale).astype(jnp.bfloat16)
    shift_f = shift.astype(jnp.float32)
    w1_f = w1.astype(jnp.float32)
    w2_f = w2.astype(jnp.float32)

    kernel = functools.partial(_ffm_kernel, inv_hw=1.0 / float(HW),
                               use_cache=use_cache, cache_dtype=cache_dtype)
    full2d = lambda n, p, hw: (0, 0)
    last_tile = n_hw - 1
    if use_cache:
        # Phase 1 never touches fsp/fcp: pin the block index to the last phase-0
        # tile so the index never changes during phase 1 -> zero extra input DMAs.
        act_map = lambda n, p, hw: (n, hw * (1 - p) + p * last_tile, 0)
    else:
        act_map = lambda n, p, hw: (n, hw, 0)

    scratch = []
    if use_cache:
        scratch.append(pltpu.VMEM((n_hw, hw_tile, Cout), cache_dtype))  # feat cache
    scratch += [pltpu.VMEM((1, Cout), jnp.float32),   # per-channel running sum
                pltpu.VMEM((1, Cout), jnp.float32)]   # (1 + sigmoid(attention)) gain

    return pl.pallas_call(
        kernel,
        out_shape=jax.ShapeDtypeStruct((N, HW, Cout), out_dtype),
        grid_spec=pltpu.PrefetchScalarGridSpec(
            num_scalar_prefetch=0,
            grid=(N, 2, n_hw),                      # (batch, phase, hw tile)
            in_specs=[
                pl.BlockSpec((1, hw_tile, Csp), act_map),
                pl.BlockSpec((1, hw_tile, Ccp), act_map),
                pl.BlockSpec((Csp, Cout), full2d),
                pl.BlockSpec((Ccp, Cout), full2d),
                pl.BlockSpec((1, Cout), full2d),
                pl.BlockSpec((Cout, Cmid), full2d),
                pl.BlockSpec((Cmid, Cout), full2d),
            ],
            # Output is only written in phase 1.  INVARIANT (do not break): during
            # phase 0 the output block index is pinned to tile 0, so it never changes
            # within phase 0 and no unwritten block is flushed back to HBM; phase 1
            # fully overwrites each (1, hw_tile, Cout) block.  Requires HW % hw_tile == 0.
            out_specs=pl.BlockSpec((1, hw_tile, Cout),
                                   lambda n, p, hw: (n, p * hw, 0)),
            scratch_shapes=scratch,
        ),
        compiler_params=pltpu.CompilerParams(
            dimension_semantics=("parallel", "arbitrary", "arbitrary"),
            vmem_limit_bytes=vmem_limit,
        ),
    )(fsp, fcp, wsp_f, wcp_f, shift_f, w1_f, w2_f)


# ------------------------------ references ------------------------------

def reference_f32(fsp, fcp, wsp, wcp, scale, shift, w1, w2):
    """Pure-f32 math, mirrors the PyTorch module exactly."""
    pre = fsp @ wsp + fcp @ wcp
    feat = jnp.maximum(pre * scale + shift, 0.0)
    atten = jnp.mean(feat, axis=1, keepdims=True)
    a = jnp.maximum(atten @ w1, 0.0)
    a = jax.nn.sigmoid(a @ w2)
    return feat * a + feat


def reference_bf16(fsp, fcp, wsp, wcp, scale, shift, w1, w2):
    """Same math as the kernel (bf16 matmul inputs, f32 accumulation, f32 feat cache)."""
    wsp_f = (wsp * scale).astype(jnp.bfloat16)
    wcp_f = (wcp * scale).astype(jnp.bfloat16)
    pre = (jnp.dot(fsp.astype(jnp.bfloat16), wsp_f, preferred_element_type=jnp.float32)
           + jnp.dot(fcp.astype(jnp.bfloat16), wcp_f, preferred_element_type=jnp.float32))
    feat = jnp.maximum(pre + shift, 0.0)
    atten = jnp.mean(feat, axis=1, keepdims=True)
    a = jnp.maximum(atten @ w1, 0.0)
    a = jax.nn.sigmoid(a @ w2)
    return feat * (1.0 + a)


if __name__ == "__main__":
    key = jax.random.PRNGKey(0)
    N, H, W = 2, 32, 32
    Csp, Ccp = 64, 64                 # fsp / fcp channels; in_chan = 128
    Cout = 128                        # out_chan (lane-dense)
    Cmid = Cout // 4                  # out_chan // 4
    HW = H * W

    ks = jax.random.split(key, 9)
    # inputs in NCHW (PyTorch convention), transposed to the kernel layout
    fsp_nchw = jax.random.normal(ks[0], (N, Csp, H, W), jnp.float32)
    fcp_nchw = jax.random.normal(ks[1], (N, Ccp, H, W), jnp.float32)
    fsp = fsp_nchw.transpose(0, 2, 3, 1).reshape(N, HW, Csp)
    fcp = fcp_nchw.transpose(0, 2, 3, 1).reshape(N, HW, Ccp)

    # convblk conv weight (out_chan, in_chan, 1, 1) -> split (Cin, Cout) halves
    w_full = jax.random.normal(ks[2], (Csp + Ccp, Cout), jnp.float32) * 0.1
    wsp, wcp = w_full[:Csp], w_full[Csp:]

    # BatchNorm (eval semantics) fused into per-channel scale/shift
    gamma = 1.0 + 0.1 * jax.random.normal(ks[3], (Cout,), jnp.float32)
    beta = 0.1 * jax.random.normal(ks[4], (Cout,), jnp.float32)
    running_mean = 0.1 * jax.random.normal(ks[5], (Cout,), jnp.float32)
    running_var = jnp.abs(jax.random.normal(ks[6], (Cout,), jnp.float32)) + 0.5
    eps = 1e-5
    scale = (gamma / jnp.sqrt(running_var + eps)).reshape(1, Cout)
    shift = (beta - running_mean * scale[0]).reshape(1, Cout)

    # attention 1x1 convs (bias=False): (Cin, Cout) layout
    w1 = jax.random.normal(ks[7], (Cout, Cmid), jnp.float32) * 0.1
    w2 = jax.random.normal(ks[8], (Cmid, Cout), jnp.float32) * 0.1

    out = feature_fusion(fsp, fcp, wsp, wcp, scale, shift, w1, w2, hw_tile=512)
    out = jax.block_until_ready(out)

    assert out.shape == (N, HW, Cout)
    # Tight check against a reference doing the same bf16-input / f32-accum math.
    ref_b = reference_bf16(fsp, fcp, wsp, wcp, scale, shift, w1, w2)
    assert jnp.allclose(out, ref_b, rtol=2e-3, atol=2e-3), "mismatch vs bf16 reference"
    # Loose sanity check against the pure-f32 PyTorch-equivalent math.
    ref_f = reference_f32(fsp, fcp, wsp, wcp, scale, shift, w1, w2)
    assert jnp.allclose(out, ref_f, rtol=1e-1, atol=1e-1), "mismatch vs f32 reference"
    print("KERNEL_OK")
</pallas_src>

<mosaic_0001>
module attributes {stable_mosaic.version = 11 : i64} {
  func.func @_ffm_kernel(%arg0: i32, %arg1: i32, %arg2: i32, %arg3: memref<1x512x64xf32, #tpu.memory_space<vmem>>, %arg4: memref<1x512x64xf32, #tpu.memory_space<vmem>>, %arg5: memref<64x128xbf16, #tpu.memory_space<vmem>>, %arg6: memref<64x128xbf16, #tpu.memory_space<vmem>>, %arg7: memref<1x128xf32, #tpu.memory_space<vmem>>, %arg8: memref<128x32xf32, #tpu.memory_space<vmem>>, %arg9: memref<32x128xf32, #tpu.memory_space<vmem>>, %arg10: memref<1x512x128xf32, #tpu.memory_space<vmem>>, %arg11: memref<2x512x128xf32, #tpu.memory_space<vmem>>, %arg12: memref<1x128xf32, #tpu.memory_space<vmem>>, %arg13: memref<1x128xf32, #tpu.memory_space<vmem>>) attributes {dimension_semantics = [#tpu.dimension_semantics<parallel>, #tpu.dimension_semantics<arbitrary>, #tpu.dimension_semantics<arbitrary>], iteration_bounds = array<i64: 2, 2, 2>, scalar_prefetch = 0 : i64, scratch_operands = 3 : i64, tpu.core_type = #tpu.core_type<tc>, window_params = [{transform_indices = @transform_0, window_bounds = array<i64: 1, 512, 64>}, {transform_indices = @transform_1, window_bounds = array<i64: 1, 512, 64>}, {pipeline_mode = #tpu.pipeline_mode<synchronous>, transform_indices = @transform_2, window_bounds = array<i64: 64, 128>}, {pipeline_mode = #tpu.pipeline_mode<synchronous>, transform_indices = @transform_3, window_bounds = array<i64: 64, 128>}, {pipeline_mode = #tpu.pipeline_mode<synchronous>, transform_indices = @transform_4, window_bounds = array<i64: 1, 128>}, {pipeline_mode = #tpu.pipeline_mode<synchronous>, transform_indices = @transform_5, window_bounds = array<i64: 128, 32>}, {pipeline_mode = #tpu.pipeline_mode<synchronous>, transform_indices = @transform_6, window_bounds = array<i64: 32, 128>}, {transform_indices = @transform_7, window_bounds = array<i64: 1, 512, 128>}]} {
    %c0_i32 = arith.constant 0 : i32
    %0 = arith.cmpi eq, %arg1, %c0_i32 : i32
    %1 = arith.extui %0 : i1 to i32
    %c0_i32_0 = arith.constant 0 : i32
    %2 = arith.cmpi ne, %1, %c0_i32_0 : i32
    scf.if %2 {
      %c0_i32_2 = arith.constant 0 : i32
      %6 = arith.cmpi eq, %arg2, %c0_i32_2 : i32
      %7 = arith.extui %6 : i1 to i32
      %c0_i32_3 = arith.constant 0 : i32
      %8 = arith.cmpi ne, %7, %c0_i32_3 : i32
      scf.if %8 {
        %cst_26 = arith.constant 0.000000e+00 : f32
        %37 = vector.broadcast %cst_26 : f32 to vector<1x128xf32>
        %c0_27 = arith.constant 0 : index
        %c0_28 = arith.constant 0 : index
        %38 = vector.load %arg12[%c0_27, %c0_28] : memref<1x128xf32, #tpu.memory_space<vmem>>, vector<1x128xf32>
        tpu.vector_store %arg12[%c0_27, %c0_28], %37 {strides = array<i32>} : memref<1x128xf32, #tpu.memory_space<vmem>>, vector<1x128xf32>,
      } else {
      }
      %c0 = arith.constant 0 : index
      %c0_4 = arith.constant 0 : index
      %c0_5 = arith.constant 0 : index
      %9 = vector.load %arg3[%c0, %c0_4, %c0_5] : memref<1x512x64xf32, #tpu.memory_space<vmem>>, vector<1x512x64xf32>
      %10 = vector.shape_cast %9 : vector<1x512x64xf32> to vector<512x64xf32>
      %11 = arith.truncf %10 : vector<512x64xf32> to vector<512x64xbf16>
      %c0_6 = arith.constant 0 : index
      %c0_7 = arith.constant 0 : index
      %c0_8 = arith.constant 0 : index
      %12 = vector.load %arg4[%c0_6, %c0_7, %c0_8] : memref<1x512x64xf32, #tpu.memory_space<vmem>>, vector<1x512x64xf32>
      %13 = vector.shape_cast %12 : vector<1x512x64xf32> to vector<512x64xf32>
      %14 = arith.truncf %13 : vector<512x64xf32> to vector<512x64xbf16>
      %c0_9 = arith.constant 0 : index
      %c0_10 = arith.constant 0 : index
      %15 = vector.load %arg5[%c0_9, %c0_10] : memref<64x128xbf16, #tpu.memory_space<vmem>>, vector<64x128xbf16>
      %cst = arith.constant dense<0.000000e+00> : vector<512x128xf32>
      %16 = tpu.matmul %11, %15, %cst {dimension_numbers = #tpu.dot_dimension_numbers<[1], [0], [0], [1], [0, 0, 1, 1], [], []>} : vector<512x64xbf16>, vector<64x128xbf16>, vector<512x128xf32> -> vector<512x128xf32>
      %c0_11 = arith.constant 0 : index
      %c0_12 = arith.constant 0 : index
      %17 = vector.load %arg6[%c0_11, %c0_12] : memref<64x128xbf16, #tpu.memory_space<vmem>>, vector<64x128xbf16>
      %cst_13 = arith.constant dense<0.000000e+00> : vector<512x128xf32>
      %18 = tpu.matmul %14, %17, %cst_13 {dimension_numbers = #tpu.dot_dimension_numbers<[1], [0], [0], [1], [0, 0, 1, 1], [], []>} : vector<512x64xbf16>, vector<64x128xbf16>, vector<512x128xf32> -> vector<512x128xf32>
      %19 = arith.addf %16, %18 : vector<512x128xf32>
      %c0_14 = arith.constant 0 : index
      %c0_15 = arith.constant 0 : index
      %20 = vector.load %arg7[%c0_14, %c0_15] : memref<1x128xf32, #tpu.memory_space<vmem>>, vector<1x128xf32>
      %21 = vector.broadcast %20 : vector<1x128xf32> to vector<512x128xf32>
      %22 = arith.addf %19, %21 : vector<512x128xf32>
      %cst_16 = arith.constant 0.000000e+00 : f32
      %23 = vector.broadcast %cst_16 : f32 to vector<512x128xf32>
      %24 = arith.maximumf %22, %23 : vector<512x128xf32>
      %c0_17 = arith.constant 0 : index
      %c0_18 = arith.constant 0 : index
      %25 = vector.load %arg12[%c0_17, %c0_18] : memref<1x128xf32, #tpu.memory_space<vmem>>, vector<1x128xf32>
      %cst_19 = arith.constant dense<0.000000e+00> : vector<128xf32>
      %26 = vector.multi_reduction <add>, %24, %cst_19 [0] : vector<512x128xf32> to vector<128xf32>
      %27 = vector.shape_cast %26 : vector<128xf32> to vector<1x128xf32>
      %28 = arith.addf %25, %27 : vector<1x128xf32>
      %c0_20 = arith.constant 0 : index
      %c0_21 = arith.constant 0 : index
      %29 = vector.load %arg12[%c0_20, %c0_21] : memref<1x128xf32, #tpu.memory_space<vmem>>, vector<1x128xf32>
      tpu.vector_store %arg12[%c0_20, %c0_21], %28 {strides = array<i32>} : memref<1x128xf32, #tpu.memory_space<vmem>>, vector<1x128xf32>,
      %30 = arith.index_cast %arg2 : i32 to index
      %c0_22 = arith.constant 0 : index
      %c0_23 = arith.constant 0 : index
      %31 = vector.load %arg11[%30, %c0_22, %c0_23] : memref<2x512x128xf32, #tpu.memory_space<vmem>>, vector<1x512x128xf32>
      %32 = vector.shape_cast %31 : vector<1x512x128xf32> to vector<512x128xf32>
      %33 = vector.shape_cast %24 : vector<512x128xf32> to vector<1x512x128xf32>
      tpu.vector_store %arg11[%30, %c0_22, %c0_23], %33 {strides = array<i32>} : memref<2x512x128xf32, #tpu.memory_space<vmem>>, vector<1x512x128xf32>,
      %c1_i32_24 = arith.constant 1 : i32
      %34 = arith.cmpi eq, %arg2, %c1_i32_24 : i32
      %35 = arith.extui %34 : i1 to i32
      %c0_i32_25 = arith.constant 0 : i32
      %36 = arith.cmpi ne, %35, %c0_i32_25 : i32
      scf.if %36 {
        %c0_26 = arith.constant 0 : index
        %c0_27 = arith.constant 0 : index
        %37 = vector.load %arg12[%c0_26, %c0_27] : memref<1x128xf32, #tpu.memory_space<vmem>>, vector<1x128xf32>
        %cst_28 = arith.constant 9.765625E-4 : f32
        %38 = vector.broadcast %cst_28 : f32 to vector<1x128xf32>
        %39 = arith.mulf %37, %38 : vector<1x128xf32>
        %c0_29 = arith.constant 0 : index
        %c0_30 = arith.constant 0 : index
        %40 = vector.load %arg8[%c0_29, %c0_30] : memref<128x32xf32, #tpu.memory_space<vmem>>, vector<128x32xf32>
        %cst_31 = arith.constant dense<0.000000e+00> : vector<1x32xf32>
        %41 = tpu.matmul %39, %40, %cst_31 {dimension_numbers = #tpu.dot_dimension_numbers<[1], [0], [0], [1], [0, 0, 1, 1], [], []>} : vector<1x128xf32>, vector<128x32xf32>, vector<1x32xf32> -> vector<1x32xf32>
        %cst_32 = arith.constant 0.000000e+00 : f32
        %42 = vector.broadcast %cst_32 : f32 to vector<1x32xf32>
        %43 = arith.maximumf %41, %42 : vector<1x32xf32>
        %c0_33 = arith.constant 0 : index
        %c0_34 = arith.constant 0 : index
        %44 = vector.load %arg9[%c0_33, %c0_34] : memref<32x128xf32, #tpu.memory_space<vmem>>, vector<32x128xf32>
        %cst_35 = arith.constant dense<0.000000e+00> : vector<1x128xf32>
        %45 = tpu.matmul %43, %44, %cst_35 {dimension_numbers = #tpu.dot_dimension_numbers<[1], [0], [0], [1], [0, 0, 1, 1], [], []>} : vector<1x32xf32>, vector<32x128xf32>, vector<1x128xf32> -> vector<1x128xf32>
        %46 = arith.negf %45 : vector<1x128xf32>
        %47 = math.exp %46 : vector<1x128xf32>
        %cst_36 = arith.constant 1.000000e+00 : f32
        %48 = vector.broadcast %cst_36 : f32 to vector<1x128xf32>
        %49 = arith.addf %48, %47 : vector<1x128xf32>
        %50 = arith.divf %48, %49 : vector<1x128xf32>
        %cst_37 = arith.constant 1.000000e+00 : f32
        %51 = vector.broadcast %cst_37 : f32 to vector<1x128xf32>
        %52 = arith.addf %51, %50 : vector<1x128xf32>
        %c0_38 = arith.constant 0 : index
        %c0_39 = arith.constant 0 : index
        %53 = vector.load %arg13[%c0_38, %c0_39] : memref<1x128xf32, #tpu.memory_space<vmem>>, vector<1x128xf32>
        tpu.vector_store %arg13[%c0_38, %c0_39], %52 {strides = array<i32>} : memref<1x128xf32, #tpu.memory_space<vmem>>, vector<1x128xf32>,
      } else {
      }
    } else {
    }
    %c1_i32 = arith.constant 1 : i32
    %3 = arith.cmpi eq, %arg1, %c1_i32 : i32
    %4 = arith.extui %3 : i1 to i32
    %c0_i32_1 = arith.constant 0 : i32
    %5 = arith.cmpi ne, %4, %c0_i32_1 : i32
    scf.if %5 {
      %6 = arith.index_cast %arg2 : i32 to index
      %c0 = arith.constant 0 : index
      %c0_2 = arith.constant 0 : index
      %7 = vector.load %arg11[%6, %c0, %c0_2] : memref<2x512x128xf32, #tpu.memory_space<vmem>>, vector<1x512x128xf32>
      %8 = vector.shape_cast %7 : vector<1x512x128xf32> to vector<512x128xf32>
      %c0_3 = arith.constant 0 : index
      %c0_4 = arith.constant 0 : index
      %9 = vector.load %arg13[%c0_3, %c0_4] : memref<1x128xf32, #tpu.memory_space<vmem>>, vector<1x128xf32>
      %10 = vector.broadcast %9 : vector<1x128xf32> to vector<512x128xf32>
      %11 = arith.mulf %8, %10 : vector<512x128xf32>
      %c0_5 = arith.constant 0 : index
      %c0_6 = arith.constant 0 : index
      %c0_7 = arith.constant 0 : index
      %12 = vector.load %arg10[%c0_5, %c0_6, %c0_7] : memref<1x512x128xf32, #tpu.memory_space<vmem>>, vector<1x512x128xf32>
      %13 = vector.shape_cast %12 : vector<1x512x128xf32> to vector<512x128xf32>
      %14 = vector.shape_cast %11 : vector<512x128xf32> to vector<1x512x128xf32>
      tpu.vector_store %arg10[%c0_5, %c0_6, %c0_7], %14 {strides = array<i32>} : memref<1x512x128xf32, #tpu.memory_space<vmem>>, vector<1x512x128xf32>,
    } else {
    }
    return
  }
  func.func @transform_0(%arg0: i32, %arg1: i32, %arg2: i32) -> (i32, i32, i32) {
    %c1_i32 = arith.constant 1 : i32
    %0 = arith.subi %c1_i32, %arg1 : i32
    %1 = arith.muli %arg2, %0 : i32
    %c1_i32_0 = arith.constant 1 : i32
    %2 = arith.muli %arg1, %c1_i32_0 : i32
    %3 = arith.addi %1, %2 : i32
    %c0_i32 = arith.constant 0 : i32
    %c0_i32_1 = arith.constant 0 : i32
    return %arg0, %3, %c0_i32 : i32, i32, i32
  }
  func.func @transform_1(%arg0: i32, %arg1: i32, %arg2: i32) -> (i32, i32, i32) {
    %c1_i32 = arith.constant 1 : i32
    %0 = arith.subi %c1_i32, %arg1 : i32
    %1 = arith.muli %arg2, %0 : i32
    %c1_i32_0 = arith.constant 1 : i32
    %2 = arith.muli %arg1, %c1_i32_0 : i32
    %3 = arith.addi %1, %2 : i32
    %c0_i32 = arith.constant 0 : i32
    %c0_i32_1 = arith.constant 0 : i32
    return %arg0, %3, %c0_i32 : i32, i32, i32
  }
  func.func @transform_2(%arg0: i32, %arg1: i32, %arg2: i32) -> (i32, i32) {
    %c0_i32 = arith.constant 0 : i32
    %c0_i32_0 = arith.constant 0 : i32
    %c0_i32_1 = arith.constant 0 : i32
    return %c0_i32, %c0_i32_0 : i32, i32
  }
  func.func @transform_3(%arg0: i32, %arg1: i32, %arg2: i32) -> (i32, i32) {
    %c0_i32 = arith.constant 0 : i32
    %c0_i32_0 = arith.constant 0 : i32
    %c0_i32_1 = arith.constant 0 : i32
    return %c0_i32, %c0_i32_0 : i32, i32
  }
  func.func @transform_4(%arg0: i32, %arg1: i32, %arg2: i32) -> (i32, i32) {
    %c0_i32 = arith.constant 0 : i32
    %c0_i32_0 = arith.constant 0 : i32
    %c0_i32_1 = arith.constant 0 : i32
    return %c0_i32, %c0_i32_0 : i32, i32
  }
  func.func @transform_5(%arg0: i32, %arg1: i32, %arg2: i32) -> (i32, i32) {
    %c0_i32 = arith.constant 0 : i32
    %c0_i32_0 = arith.constant 0 : i32
    %c0_i32_1 = arith.constant 0 : i32
    return %c0_i32, %c0_i32_0 : i32, i32
  }
  func.func @transform_6(%arg0: i32, %arg1: i32, %arg2: i32) -> (i32, i32) {
    %c0_i32 = arith.constant 0 : i32
    %c0_i32_0 = arith.constant 0 : i32
    %c0_i32_1 = arith.constant 0 : i32
    return %c0_i32, %c0_i32_0 : i32, i32
  }
  func.func @transform_7(%arg0: i32, %arg1: i32, %arg2: i32) -> (i32, i32, i32) {
    %0 = arith.muli %arg1, %arg2 : i32
    %c0_i32 = arith.constant 0 : i32
    %c0_i32_0 = arith.constant 0 : i32
    return %arg0, %0, %c0_i32 : i32, i32, i32
  }
}

</mosaic_0001>

<llo_original>
// kernel: tpu_custom_call.1
$region0: #{tpu_custom_call.1}
  #allocation0 [shape = 'u32[]', space=smem, size = 0x4, offset = 0x4, fixed_abs, tag = 'smem constant byte address 0x4 - core index']
  #allocation1 [shape = 'u32[144,128]{1,0:T(1,128)}', space=vmem, size = 0x12000, scoped, tag = 'internal scratch']
  #allocation2 [shape = 'f32[2,512,128]{2,1,0:T(8,128)}', space=vmem, size = 0x80000, scoped, tag = 'scratch operand']
  #allocation3 [shape = 'f32[1,128]{1,0:T(1,128)}', space=vmem, size = 0x200, scoped, tag = 'scratch operand']
  #allocation4 [shape = 'f32[1,128]{1,0:T(1,128)}', space=vmem, size = 0x200, scoped, tag = 'scratch operand']
  %s0 = inlined_call_operand.vmem [shape: f32[2,1024,64], index: 0, kind: input, shape index: {}]
  %s1 = inlined_call_operand.vmem [shape: f32[2,1024,64], index: 1, kind: input, shape index: {}]
  %s2 = inlined_call_operand.vmem [shape: bf16[64,128], index: 2, kind: input, shape index: {}]
  %s3 = inlined_call_operand.vmem [shape: bf16[64,128], index: 3, kind: input, shape index: {}]
  %s4 = inlined_call_operand.vmem [shape: f32[1,128], index: 4, kind: input, shape index: {}]
  %s5 = inlined_call_operand.vmem [shape: f32[128,32], index: 5, kind: input, shape index: {}]
  %s6 = inlined_call_operand.vmem [shape: f32[32,128], index: 6, kind: input, shape index: {}]
  %s7 = inlined_call_operand.hbm [shape: f32[2,1024,128], index: 7, kind: output, shape index: {}]
  %s8 = sld [smem:[#allocation0]]
  $region77: #{tpu_custom_call.1} parent=0
    _
  %s10 = ssub.s32 1, %s8
  %s11 = scalar_select 0, %s10, %s8
  $region1: #{tpu_custom_call.1} parent=0
    #allocation5 [shape = 'u8[524288]{0}', space=vmem, size = 0x80000, scoped, tag = 'output window, operand 0']
    #allocation6 [shape = 's32[2]{0}', space=sflag, size = 0x8, scoped, tag = 'scoped memory for tpu_custom_call.1']
    %12 = vsyncpa [#allocation6], 0
    %s13 = scalar_lea.sflag [#allocation6], 1
    %14 = vsyncpa %s13, 0
    loop: start=0, step=1, limit=10
    $region2: #{tpu_custom_call.1} parent=1 // loop_pre_header
      _
    $region3: #{tpu_custom_call.1} parent=1 // loop_header
      %s16 = sphi 0, %s20
      %p17 = scmp.ge.s32.totalorder %s16, 10
      %s23 = sphi 0, %s42
      %s24 = sphi 0, %s38
      %s25 = sphi 0, %s34
      %s26 = sphi 0, %s23
      %s27 = sphi 0, %s24
      %s28 = sphi 0, %s25
      %s29 = sphi 0, %s26
      %s30 = sphi 0, %s27
      %s31 = sphi 0, %s28
      %s53 = sphi 0, %s55
      %s56 = sphi 0, %s53
      %s57 = sphi 0, %s56
      %s73 = sphi 0, %s57
      %s87 = sphi 0, %s89
      %s90 = sphi 0, %s87
      %s91 = sphi 0, %s90
      %s107 = sphi 0, %s91
      %s111 = sphi 0, %s111
      %s113 = sphi 0, %s111
      %s114 = sphi 0, %s113
      %s128 = sphi 0, %s114
      %s132 = sphi 0, %s132
      %s134 = sphi 0, %s132
      %s135 = sphi 0, %s134
      %s149 = sphi 0, %s135
      %s153 = sphi 0, %s153
      %s155 = sphi 0, %s153
      %s156 = sphi 0, %s155
      %s170 = sphi 0, %s156
      %s174 = sphi 0, %s174
      %s176 = sphi 0, %s174
      %s177 = sphi 0, %s176
      %s191 = sphi 0, %s177
      %s195 = sphi 0, %s195
      %s197 = sphi 0, %s195
      %s198 = sphi 0, %s197
      %s212 = sphi 0, %s198
      %s222 = sphi 0, %s224
      %s225 = sphi 0, %s222
      %s226 = sphi 0, %s225
      %s242 = sphi 0, %s226
    $region4: #{tpu_custom_call.1} parent=1 // loop_header_branch
      %19 = sbr.rel (%p17) target = $region8
    $region5: #{tpu_custom_call.1} parent=1 // loop_body
      %s21 = ssub.s32 %s16, 1
      %s22 = ssub.s32 %s16, 2
      %s32 = sadd.s32 1, %s25
      %p33 = scmp.ge.s32.totalorder %s32, 2
      %s34 = scalar_select %p33, 0, %s32
      %s35 = sadd.s32 1, %s24
      %s36 = scalar_select %p33, %s35, %s24
      %p37 = scmp.ge.s32.totalorder %s36, 2
      %s38 = scalar_select %p37, 0, %s36
      %s39 = sadd.s32 1, %s23
      %s40 = scalar_select %p37, %s39, %s23
      %p41 = scmp.ge.s32.totalorder %s40, 2
      %s42 = scalar_select %p41, 0, %s40
      %s43 = ssub.s32 1, %s24
      %s44 = smul.u32 %s25, %s43
      %s45 = sadd.s32 %s44, %s24
      %s46 = ssub.s32 1, %s38
      %s47 = smul.u32 %s34, %s46
      %s48 = sadd.s32 %s47, %s38
      %s49 = ssub.s32 %s23, %s42
      %s50 = ssub.s32 %s45, %s48
      %s51 = sor.u32 %s49, %s50
      %p52 = scmp.eq.s32.totalorder %s51, 0
      %s54 = sadd.s32 %s53, 1
      %s55 = scalar_select %p52, %s53, %s54
      %p58 = pneg %p52
      %p59 = scmp.eq.s32.totalorder %s16, 7
      %p60 = por %p58, %p59
      %p61 = scmp.ne.s32.totalorder %s53, %s56
      %p62 = scmp.eq.s32.totalorder %s16, 0
      %p63 = por %p61, %p62
      %p64 = scmp.ne.s32.totalorder %s53, %s56
      %p65 = scmp.eq.s32.totalorder %s21, 7
      %p66 = por %p64, %p65
      %p67 = scmp.ne.s32.totalorder %s56, %s57
      %p68 = scmp.eq.s32.totalorder %s21, 0
      %p69 = por %p67, %p68
      %p70 = scmp.ne.s32.totalorder %s56, %s57
      %p71 = scmp.eq.s32.totalorder %s22, 7
      %p72 = por %p70, %p71
      %p74 = scmp.ne.s32.totalorder %s57, %s73
      %p75 = scmp.eq.s32.totalorder %s22, 0
      %p76 = por %p74, %p75
      %s77 = ssub.s32 1, %s24
      %s78 = smul.u32 %s25, %s77
      %s79 = sadd.s32 %s78, %s24
      %s80 = ssub.s32 1, %s38
      %s81 = smul.u32 %s34, %s80
      %s82 = sadd.s32 %s81, %s38
      %s83 = ssub.s32 %s23, %s42
      %s84 = ssub.s32 %s79, %s82
      %s85 = sor.u32 %s83, %s84
      %p86 = scmp.eq.s32.totalorder %s85, 0
      %s88 = sadd.s32 %s87, 1
      %s89 = scalar_select %p86, %s87, %s88
      %p92 = pneg %p86
      %p93 = scmp.eq.s32.totalorder %s16, 7
      %p94 = por %p92, %p93
      %p95 = scmp.ne.s32.totalorder %s87, %s90
      %p96 = scmp.eq.s32.totalorder %s16, 0
      %p97 = por %p95, %p96
      %p98 = scmp.ne.s32.totalorder %s87, %s90
      %p99 = scmp.eq.s32.totalorder %s21, 7
      %p100 = por %p98, %p99
      %p101 = scmp.ne.s32.totalorder %s90, %s91
      %p102 = scmp.eq.s32.totalorder %s21, 0
      %p103 = por %p101, %p102
      %p104 = scmp.ne.s32.totalorder %s90, %s91
      %p105 = scmp.eq.s32.totalorder %s22, 7
      %p106 = por %p104, %p105
      %p108 = scmp.ne.s32.totalorder %s91, %s107
      %p109 = scmp.eq.s32.totalorder %s22, 0
      %p110 = por %p108, %p109
      %s112 = sadd.s32 %s111, 1
      %p115 = scmp.eq.s32.totalorder %s16, 7
      %p116 = scmp.ne.s32.totalorder %s111, %s113
      %p117 = scmp.eq.s32.totalorder %s16, 0
      %p118 = por %p116, %p117
      %p119 = scmp.ne.s32.totalorder %s111, %s113
      %p120 = scmp.eq.s32.totalorder %s21, 7
      %p121 = por %p119, %p120
      %p122 = scmp.ne.s32.totalorder %s113, %s114
      %p123 = scmp.eq.s32.totalorder %s21, 0
      %p124 = por %p122, %p123
      %p125 = scmp.ne.s32.totalorder %s113, %s114
      %p126 = scmp.eq.s32.totalorder %s22, 7
      %p127 = por %p125, %p126
      %p129 = scmp.ne.s32.totalorder %s114, %s128
      %p130 = scmp.eq.s32.totalorder %s22, 0
      %p131 = por %p129, %p130
      %s133 = sadd.s32 %s132, 1
      %p136 = scmp.eq.s32.totalorder %s16, 7
      %p137 = scmp.ne.s32.totalorder %s132, %s134
      %p138 = scmp.eq.s32.totalorder %s16, 0
      %p139 = por %p137, %p138
      %p140 = scmp.ne.s32.totalorder %s132, %s134
      %p141 = scmp.eq.s32.totalorder %s21, 7
      %p142 = por %p140, %p141
      %p143 = scmp.ne.s32.totalorder %s134, %s135
      %p144 = scmp.eq.s32.totalorder %s21, 0
      %p145 = por %p143, %p144
      %p146 = scmp.ne.s32.totalorder %s134, %s135
      %p147 = scmp.eq.s32.totalorder %s22, 7
      %p148 = por %p146, %p147
      %p150 = scmp.ne.s32.totalorder %s135, %s149
      %p151 = scmp.eq.s32.totalorder %s22, 0
      %p152 = por %p150, %p151
      %s154 = sadd.s32 %s153, 1
      %p157 = scmp.eq.s32.totalorder %s16, 7
      %p158 = scmp.ne.s32.totalorder %s153, %s155
      %p159 = scmp.eq.s32.totalorder %s16, 0
      %p160 = por %p158, %p159
      %p161 = scmp.ne.s32.totalorder %s153, %s155
      %p162 = scmp.eq.s32.totalorder %s21, 7
      %p163 = por %p161, %p162
      %p164 = scmp.ne.s32.totalorder %s155, %s156
      %p165 = scmp.eq.s32.totalorder %s21, 0
      %p166 = por %p164, %p165
      %p167 = scmp.ne.s32.totalorder %s155, %s156
      %p168 = scmp.eq.s32.totalorder %s22, 7
      %p169 = por %p167, %p168
      %p171 = scmp.ne.s32.totalorder %s156, %s170
      %p172 = scmp.eq.s32.totalorder %s22, 0
      %p173 = por %p171, %p172
      %s175 = sadd.s32 %s174, 1
      %p178 = scmp.eq.s32.totalorder %s16, 7
      %p179 = scmp.ne.s32.totalorder %s174, %s176
      %p180 = scmp.eq.s32.totalorder %s16, 0
      %p181 = por %p179, %p180
      %p182 = scmp.ne.s32.totalorder %s174, %s176
      %p183 = scmp.eq.s32.totalorder %s21, 7
      %p184 = por %p182, %p183
      %p185 = scmp.ne.s32.totalorder %s176, %s177
      %p186 = scmp.eq.s32.totalorder %s21, 0
      %p187 = por %p185, %p186
      %p188 = scmp.ne.s32.totalorder %s176, %s177
      %p189 = scmp.eq.s32.totalorder %s22, 7
      %p190 = por %p188, %p189
      %p192 = scmp.ne.s32.totalorder %s177, %s191
      %p193 = scmp.eq.s32.totalorder %s22, 0
      %p194 = por %p192, %p193
      %s196 = sadd.s32 %s195, 1
      %p199 = scmp.eq.s32.totalorder %s16, 7
      %p200 = scmp.ne.s32.totalorder %s195, %s197
      %p201 = scmp.eq.s32.totalorder %s16, 0
      %p202 = por %p200, %p201
      %p203 = scmp.ne.s32.totalorder %s195, %s197
      %p204 = scmp.eq.s32.totalorder %s21, 7
      %p205 = por %p203, %p204
      %p206 = scmp.ne.s32.totalorder %s197, %s198
      %p207 = scmp.eq.s32.totalorder %s21, 0
      %p208 = por %p206, %p207
      %p209 = scmp.ne.s32.totalorder %s197, %s198
      %p210 = scmp.eq.s32.totalorder %s22, 7
      %p211 = por %p209, %p210
      %p213 = scmp.ne.s32.totalorder %s198, %s212
      %p214 = scmp.eq.s32.totalorder %s22, 0
      %p215 = por %p213, %p214
      %s216 = smul.u32 %s24, %s25
      %s217 = smul.u32 %s38, %s34
      %s218 = ssub.s32 %s23, %s42
      %s219 = ssub.s32 %s216, %s217
      %s220 = sor.u32 %s218, %s219
      %p221 = scmp.eq.s32.totalorder %s220, 0
      %s223 = sadd.s32 %s222, 1
      %s224 = scalar_select %p221, %s222, %s223
      %p227 = pneg %p221
      %p228 = scmp.eq.s32.totalorder %s16, 7
      %p229 = por %p227, %p228
      %p230 = scmp.ne.s32.totalorder %s222, %s225
      %p231 = scmp.eq.s32.totalorder %s16, 0
      %p232 = por %p230, %p231
      %p233 = scmp.ne.s32.totalorder %s222, %s225
      %p234 = scmp.eq.s32.totalorder %s21, 7
      %p235 = por %p233, %p234
      %p236 = scmp.ne.s32.totalorder %s225, %s226
      %p237 = scmp.eq.s32.totalorder %s21, 0
      %p238 = por %p236, %p237
      %p239 = scmp.ne.s32.totalorder %s225, %s226
      %p240 = scmp.eq.s32.totalorder %s22, 7
      %p241 = por %p239, %p240
      %p243 = scmp.ne.s32.totalorder %s226, %s242
      %p244 = scmp.eq.s32.totalorder %s22, 0
      %p245 = por %p243, %p244
      %p246 = scmp.le.s32.totalorder 1, %s16
      %p247 = scmp.lt.s32.totalorder %s16, 9
      %p248 = pnand %p246, %p247
      %p249 = pneg %p248
      // Predicated region
      $region9: #{tpu_custom_call.1} parent=5 // pred_check
        _
      $region10: #{tpu_custom_call.1} parent=5 // pred_check_branch
        %251 = sbr.rel (%p248) target = $region12
      $region11: #{tpu_custom_call.1} parent=5 // pred_region
        %s252 = ssub.s32 %s16, 1
        // Predicated region
        $region13: #{tpu_custom_call.1} parent=11 // pred_check
          %p253 = pneg %p124
        $region14: #{tpu_custom_call.1} parent=11 // pred_check_branch
          %255 = sbr.rel (%p253) target = $region16
        $region15: #{tpu_custom_call.1} parent=11 // pred_region
          _
        $region16: #{tpu_custom_call.1} parent=11 // pred_fallthru
          _
        // Predicated region
        $region17: #{tpu_custom_call.1} parent=11 // pred_check
          %p256 = pneg %p145
        $region18: #{tpu_custom_call.1} parent=11 // pred_check_branch
          %258 = sbr.rel (%p256) target = $region20
        $region19: #{tpu_custom_call.1} parent=11 // pred_region
          _
        $region20: #{tpu_custom_call.1} parent=11 // pred_fallthru
          _
        // Predicated region
        $region21: #{tpu_custom_call.1} parent=11 // pred_check
          %p259 = pneg %p166
        $region22: #{tpu_custom_call.1} parent=11 // pred_check_branch
          %261 = sbr.rel (%p259) target = $region24
        $region23: #{tpu_custom_call.1} parent=11 // pred_region
          _
        $region24: #{tpu_custom_call.1} parent=11 // pred_fallthru
          _
        // Predicated region
        $region25: #{tpu_custom_call.1} parent=11 // pred_check
          %p262 = pneg %p187
        $region26: #{tpu_custom_call.1} parent=11 // pred_check_branch
          %264 = sbr.rel (%p262) target = $region28
        $region27: #{tpu_custom_call.1} parent=11 // pred_region
          _
        $region28: #{tpu_custom_call.1} parent=11 // pred_fallthru
          _
        // Predicated region
        $region29: #{tpu_custom_call.1} parent=11 // pred_check
          %p265 = pneg %p208
        $region30: #{tpu_custom_call.1} parent=11 // pred_check_branch
          %267 = sbr.rel (%p265) target = $region32
        $region31: #{tpu_custom_call.1} parent=11 // pred_region
          _
        $region32: #{tpu_custom_call.1} parent=11 // pred_fallthru
          _
      $region12: #{tpu_custom_call.1} parent=5 // pred_fallthru
        _
      %p268 = scmp.lt.s32.totalorder %s16, 8
      // Predicated region
      $region33: #{tpu_custom_call.1} parent=5 // pred_check
        %p269 = pneg %p268
      $region34: #{tpu_custom_call.1} parent=5 // pred_check_branch
        %271 = sbr.rel (%p269) target = $region36
      $region35: #{tpu_custom_call.1} parent=5 // pred_region
        // Predicated region
        $region37: #{tpu_custom_call.1} parent=35 // pred_check
          %p272 = pneg %p63
        $region38: #{tpu_custom_call.1} parent=35 // pred_check_branch
          %274 = sbr.rel (%p272) target = $region40
        $region39: #{tpu_custom_call.1} parent=35 // pred_region
          %s275 = ssub.s32 1, %s24
          %s276 = smul.u32 %s25, %s275
          %s277 = sadd.s32 %s276, %s24
          %s278 = smul.u32 64, %s277
          %p279 = scmp.lt.s32.totalorder %s23, 1
          %s280 = scalar_select %p279, %s23, 1
          %p281 = scmp.lt.s32.totalorder %s278, 127
          %s282 = scalar_select %p281, %s278, 127
          %s283 = smul.addr %s280, 128
          %s284 = sadd.s32 %s282, %s283
          %s285 = smul.addr %s284, 8
          %s286 = scalar_lea.vmem %s0, %s285
          %s287 = ssub.s32 1, %s24
          %s288 = smul.u32 %s25, %s287
          %s289 = sadd.s32 %s288, %s24
          %s290 = smul.u32 64, %s289
        $region40: #{tpu_custom_call.1} parent=35 // pred_fallthru
          _
        // Predicated region
        $region41: #{tpu_custom_call.1} parent=35 // pred_check
          %p291 = pneg %p97
        $region42: #{tpu_custom_call.1} parent=35 // pred_check_branch
          %293 = sbr.rel (%p291) target = $region44
        $region43: #{tpu_custom_call.1} parent=35 // pred_region
          %s294 = ssub.s32 1, %s24
          %s295 = smul.u32 %s25, %s294
          %s296 = sadd.s32 %s295, %s24
          %s297 = smul.u32 64, %s296
          %p298 = scmp.lt.s32.totalorder %s23, 1
          %s299 = scalar_select %p298, %s23, 1
          %p300 = scmp.lt.s32.totalorder %s297, 127
          %s301 = scalar_select %p300, %s297, 127
          %s302 = smul.addr %s299, 128
          %s303 = sadd.s32 %s301, %s302
          %s304 = smul.addr %s303, 8
          %s305 = scalar_lea.vmem %s1, %s304
          %s306 = ssub.s32 1, %s24
          %s307 = smul.u32 %s25, %s306
          %s308 = sadd.s32 %s307, %s24
          %s309 = smul.u32 64, %s308
        $region44: #{tpu_custom_call.1} parent=35 // pred_fallthru
          _
      $region36: #{tpu_custom_call.1} parent=5 // pred_fallthru
        _
      %p310 = scmp.le.s32.totalorder 1, %s16
      %p311 = scmp.lt.s32.totalorder %s16, 9
      %p312 = pnand %p310, %p311
      %p313 = pneg %p312
      // Predicated region
      $region45: #{tpu_custom_call.1} parent=5 // pred_check
        _
      $region46: #{tpu_custom_call.1} parent=5 // pred_check_branch
        %315 = sbr.rel (%p312) target = $region48
      $region47: #{tpu_custom_call.1} parent=5 // pred_region
        %s316 = ssub.s32 %s16, 1
        %s317 = ssub.s32 1, %s27
        %s318 = smul.u32 %s28, %s317
        %s319 = sadd.s32 %s318, %s27
        %s320 = smul.u32 64, %s319
        %p321 = scmp.lt.s32.totalorder %s26, 1
        %s322 = scalar_select %p321, %s26, 1
        %p323 = scmp.lt.s32.totalorder %s320, 127
        %s324 = scalar_select %p323, %s320, 127
        %s325 = smul.addr %s322, 128
        %s326 = sadd.s32 %s324, %s325
        %s327 = smul.addr %s326, 8
        %s328 = scalar_lea.vmem %s0, %s327
        %p329 = pneg %p69
        %p330 = pneg %p66
        %s331 = ssub.s32 1, %s27
        %s332 = smul.u32 %s28, %s331
        %s333 = sadd.s32 %s332, %s27
        %s334 = smul.u32 64, %s333
        %p335 = scmp.lt.s32.totalorder %s26, 1
        %s336 = scalar_select %p335, %s26, 1
        %p337 = scmp.lt.s32.totalorder %s334, 127
        %s338 = scalar_select %p337, %s334, 127
        %s339 = smul.addr %s336, 128
        %s340 = sadd.s32 %s338, %s339
        %s341 = smul.addr %s340, 8
        %s342 = scalar_lea.vmem %s1, %s341
        %p343 = pneg %p103
        %p344 = pneg %p100
        %p345 = pneg %p124
        %p346 = pneg %p121
        %p347 = pneg %p145
        %p348 = pneg %p142
        %p349 = pneg %p166
        %p350 = pneg %p163
        %p351 = pneg %p187
        %p352 = pneg %p184
        %p353 = pneg %p208
        %p354 = pneg %p205
        %p355 = pneg %p238
        %p356 = pneg %p235
        %s357 = sand.u32 %s225, 1
        %s358 = scalar_lea.sflag [#allocation6], %s357
        %s359 = sand.u32 %s225, 1
        %s360 = smul.addr %s359, 512
        %s361 = scalar_lea.vmem [#allocation5], %s360
        %s362 = ssub.s32 1, %s27
        %s363 = smul.u32 %s28, %s362
        %s364 = sadd.s32 %s363, %s27
        %s365 = smul.u32 64, %s364
        %p366 = scmp.lt.s32.totalorder %s26, 1
        %s367 = scalar_select %p366, %s26, 1
        %p368 = scmp.lt.s32.totalorder %s365, 127
        %s369 = scalar_select %p368, %s365, 127
        %s370 = smul.addr %s367, 128
        %s371 = sadd.s32 %s369, %s370
        %s372 = smul.addr %s371, 8
        %s373 = scalar_lea.vmem %s0, %s372
        %s374 = ssub.s32 1, %s27
        %s375 = smul.u32 %s28, %s374
        %s376 = sadd.s32 %s375, %s27
        %s377 = smul.u32 64, %s376
        %s378 = ssub.s32 1, %s27
        %s379 = smul.u32 %s28, %s378
        %s380 = sadd.s32 %s379, %s27
        %s381 = smul.u32 64, %s380
        %p382 = scmp.lt.s32.totalorder %s26, 1
        %s383 = scalar_select %p382, %s26, 1
        %p384 = scmp.lt.s32.totalorder %s381, 127
        %s385 = scalar_select %p384, %s381, 127
        %s386 = smul.addr %s383, 128
        %s387 = sadd.s32 %s385, %s386
        %s388 = smul.addr %s387, 8
        %s389 = scalar_lea.vmem %s1, %s388
        %s390 = ssub.s32 1, %s27
        %s391 = smul.u32 %s28, %s390
        %s392 = sadd.s32 %s391, %s27
        %s393 = smul.u32 64, %s392
        %s394 = smul.u32 %s27, %s28
        %s395 = smul.u32 64, %s394
        %p397 = scmp.eq.s32.totalorder %s27, 0
        // Predicated region
        $region49: #{tpu_custom_call.1} parent=47 // pred_check
          %p398 = pneg %p397
        $region50: #{tpu_custom_call.1} parent=47 // pred_check_branch
          %400 = sbr.rel (%p398) target = $region52
        $region51: #{tpu_custom_call.1} parent=47 // pred_region
          %p401 = scmp.eq.s32.totalorder %s28, 0
          // Predicated region
          $region53: #{tpu_custom_call.1} parent=51 // pred_check
            %p402 = pneg %p401
          $region54: #{tpu_custom_call.1} parent=51 // pred_check_branch
            %404 = sbr.rel (%p402) target = $region56
          $region55: #{tpu_custom_call.1} parent=51 // pred_region
            %405 = vst [vmem:[#allocation3] sm:$0x1] 0.0
          $region56: #{tpu_custom_call.1} parent=51 // pred_fallthru
            _
          %v406 = vld [vmem:[%s373] sm:$0xff]
          %v407 = vld [vmem:[%s373 + $0x8] sm:$0xff]
          %v408 = vld [vmem:[%s373 + $0x10] sm:$0xff]
          %v409 = vld [vmem:[%s373 + $0x18] sm:$0xff]
          %v410 = vld [vmem:[%s373 + $0x20] sm:$0xff]
          %v411 = vld [vmem:[%s373 + $0x28] sm:$0xff]
          %v412 = vld [vmem:[%s373 + $0x30] sm:$0xff]
          %v413 = vld [vmem:[%s373 + $0x38] sm:$0xff]
          %v414 = vld [vmem:[%s373 + $0x40] sm:$0xff]
          %v415 = vld [vmem:[%s373 + $0x48] sm:$0xff]
          %v416 = vld [vmem:[%s373 + $0x50] sm:$0xff]
          %v417 = vld [vmem:[%s373 + $0x58] sm:$0xff]
          %v418 = vld [vmem:[%s373 + $0x60] sm:$0xff]
          %v419 = vld [vmem:[%s373 + $0x68] sm:$0xff]
          %v420 = vld [vmem:[%s373 + $0x70] sm:$0xff]
          %v421 = vld [vmem:[%s373 + $0x78] sm:$0xff]
          %v422 = vld [vmem:[%s373 + $0x80] sm:$0xff]
          %v423 = vld [vmem:[%s373 + $0x88] sm:$0xff]
          %v424 = vld [vmem:[%s373 + $0x90] sm:$0xff]
          %v425 = vld [vmem:[%s373 + $0x98] sm:$0xff]
          %v426 = vld [vmem:[%s373 + $0xa0] sm:$0xff]
          %v427 = vld [vmem:[%s373 + $0xa8] sm:$0xff]
          %v428 = vld [vmem:[%s373 + $0xb0] sm:$0xff]
          %v429 = vld [vmem:[%s373 + $0xb8] sm:$0xff]
          %v430 = vld [vmem:[%s373 + $0xc0] sm:$0xff]
          %v431 = vld [vmem:[%s373 + $0xc8] sm:$0xff]
          %v432 = vld [vmem:[%s373 + $0xd0] sm:$0xff]
          %v433 = vld [vmem:[%s373 + $0xd8] sm:$0xff]
          %v434 = vld [vmem:[%s373 + $0xe0] sm:$0xff]
          %v435 = vld [vmem:[%s373 + $0xe8] sm:$0xff]
          %v436 = vld [vmem:[%s373 + $0xf0] sm:$0xff]
          %v437 = vld [vmem:[%s373 + $0xf8] sm:$0xff]
          %v438 = vld [vmem:[%s373 + $0x100] sm:$0xff]
          %v439 = vld [vmem:[%s373 + $0x108] sm:$0xff]
          %v440 = vld [vmem:[%s373 + $0x110] sm:$0xff]
          %v441 = vld [vmem:[%s373 + $0x118] sm:$0xff]
          %v442 = vld [vmem:[%s373 + $0x120] sm:$0xff]
          %v443 = vld [vmem:[%s373 + $0x128] sm:$0xff]
          %v444 = vld [vmem:[%s373 + $0x130] sm:$0xff]
          %v445 = vld [vmem:[%s373 + $0x138] sm:$0xff]
          %v446 = vld [vmem:[%s373 + $0x140] sm:$0xff]
          %v447 = vld [vmem:[%s373 + $0x148] sm:$0xff]
          %v448 = vld [vmem:[%s373 + $0x150] sm:$0xff]
          %v449 = vld [vmem:[%s373 + $0x158] sm:$0xff]
          %v450 = vld [vmem:[%s373 + $0x160] sm:$0xff]
          %v451 = vld [vmem:[%s373 + $0x168] sm:$0xff]
          %v452 = vld [vmem:[%s373 + $0x170] sm:$0xff]
          %v453 = vld [vmem:[%s373 + $0x178] sm:$0xff]
          %v454 = vld [vmem:[%s373 + $0x180] sm:$0xff]
          %v455 = vld [vmem:[%s373 + $0x188] sm:$0xff]
          %v456 = vld [vmem:[%s373 + $0x190] sm:$0xff]
          %v457 = vld [vmem:[%s373 + $0x198] sm:$0xff]
          %v458 = vld [vmem:[%s373 + $0x1a0] sm:$0xff]
          %v459 = vld [vmem:[%s373 + $0x1a8] sm:$0xff]
          %v460 = vld [vmem:[%s373 + $0x1b0] sm:$0xff]
          %v461 = vld [vmem:[%s373 + $0x1b8] sm:$0xff]
          %v462 = vld [vmem:[%s373 + $0x1c0] sm:$0xff]
          %v463 = vld [vmem:[%s373 + $0x1c8] sm:$0xff]
          %v464 = vld [vmem:[%s373 + $0x1d0] sm:$0xff]
          %v465 = vld [vmem:[%s373 + $0x1d8] sm:$0xff]
          %v466 = vld [vmem:[%s373 + $0x1e0] sm:$0xff]
          %v467 = vld [vmem:[%s373 + $0x1e8] sm:$0xff]
          %v468 = vld [vmem:[%s373 + $0x1f0] sm:$0xff]
          %v469 = vld [vmem:[%s373 + $0x1f8] sm:$0xff]
          %v470 = vpack.c.bf16 %v407, %v406
          %v471 = vpack.c.bf16 %v409, %v408
          %v472 = vpack.c.bf16 %v411, %v410
          %v473 = vpack.c.bf16 %v413, %v412
          %v474 = vpack.c.bf16 %v415, %v414
          %v475 = vpack.c.bf16 %v417, %v416
          %v476 = vpack.c.bf16 %v419, %v418
          %v477 = vpack.c.bf16 %v421, %v420
          %v478 = vpack.c.bf16 %v423, %v422
          %v479 = vpack.c.bf16 %v425, %v424
          %v480 = vpack.c.bf16 %v427, %v426
          %v481 = vpack.c.bf16 %v429, %v428
          %v482 = vpack.c.bf16 %v431, %v430
          %v483 = vpack.c.bf16 %v433, %v432
          %v484 = vpack.c.bf16 %v435, %v434
          %v485 = vpack.c.bf16 %v437, %v436
          %v486 = vpack.c.bf16 %v439, %v438
          %v487 = vpack.c.bf16 %v441, %v440
          %v488 = vpack.c.bf16 %v443, %v442
          %v489 = vpack.c.bf16 %v445, %v444
          %v490 = vpack.c.bf16 %v447, %v446
          %v491 = vpack.c.bf16 %v449, %v448
          %v492 = vpack.c.bf16 %v451, %v450
          %v493 = vpack.c.bf16 %v453, %v452
          %v494 = vpack.c.bf16 %v455, %v454
          %v495 = vpack.c.bf16 %v457, %v456
          %v496 = vpack.c.bf16 %v459, %v458
          %v497 = vpack.c.bf16 %v461, %v460
          %v498 = vpack.c.bf16 %v463, %v462
          %v499 = vpack.c.bf16 %v465, %v464
          %v500 = vpack.c.bf16 %v467, %v466
          %v501 = vpack.c.bf16 %v469, %v468
          %v502 = vld [vmem:[%s389] sm:$0xff]
          %v503 = vld [vmem:[%s389 + $0x8] sm:$0xff]
          %v504 = vld [vmem:[%s389 + $0x10] sm:$0xff]
          %v505 = vld [vmem:[%s389 + $0x18] sm:$0xff]
          %v506 = vld [vmem:[%s389 + $0x20] sm:$0xff]
          %v507 = vld [vmem:[%s389 + $0x28] sm:$0xff]
          %v508 = vld [vmem:[%s389 + $0x30] sm:$0xff]
          %v509 = vld [vmem:[%s389 + $0x38] sm:$0xff]
          %v510 = vld [vmem:[%s389 + $0x40] sm:$0xff]
          %v511 = vld [vmem:[%s389 + $0x48] sm:$0xff]
          %v512 = vld [vmem:[%s389 + $0x50] sm:$0xff]
          %v513 = vld [vmem:[%s389 + $0x58] sm:$0xff]
          %v514 = vld [vmem:[%s389 + $0x60] sm:$0xff]
          %v515 = vld [vmem:[%s389 + $0x68] sm:$0xff]
          %v516 = vld [vmem:[%s389 + $0x70] sm:$0xff]
          %v517 = vld [vmem:[%s389 + $0x78] sm:$0xff]
          %v518 = vld [vmem:[%s389 + $0x80] sm:$0xff]
          %v519 = vld [vmem:[%s389 + $0x88] sm:$0xff]
          %v520 = vld [vmem:[%s389 + $0x90] sm:$0xff]
          %v521 = vld [vmem:[%s389 + $0x98] sm:$0xff]
          %v522 = vld [vmem:[%s389 + $0xa0] sm:$0xff]
          %v523 = vld [vmem:[%s389 + $0xa8] sm:$0xff]
          %v524 = vld [vmem:[%s389 + $0xb0] sm:$0xff]
          %v525 = vld [vmem:[%s389 + $0xb8] sm:$0xff]
          %v526 = vld [vmem:[%s389 + $0xc0] sm:$0xff]
          %v527 = vld [vmem:[%s389 + $0xc8] sm:$0xff]
          %v528 = vld [vmem:[%s389 + $0xd0] sm:$0xff]
          %v529 = vld [vmem:[%s389 + $0xd8] sm:$0xff]
          %v530 = vld [vmem:[%s389 + $0xe0] sm:$0xff]
          %v531 = vld [vmem:[%s389 + $0xe8] sm:$0xff]
          %v532 = vld [vmem:[%s389 + $0xf0] sm:$0xff]
          %v533 = vld [vmem:[%s389 + $0xf8] sm:$0xff]
          %v534 = vld [vmem:[%s389 + $0x100] sm:$0xff]
          %v535 = vld [vmem:[%s389 + $0x108] sm:$0xff]
          %v536 = vld [vmem:[%s389 + $0x110] sm:$0xff]
          %v537 = vld [vmem:[%s389 + $0x118] sm:$0xff]
          %v538 = vld [vmem:[%s389 + $0x120] sm:$0xff]
          %v539 = vld [vmem:[%s389 + $0x128] sm:$0xff]
          %v540 = vld [vmem:[%s389 + $0x130] sm:$0xff]
          %v541 = vld [vmem:[%s389 + $0x138] sm:$0xff]
          %v542 = vld [vmem:[%s389 + $0x140] sm:$0xff]
          %v543 = vld [vmem:[%s389 + $0x148] sm:$0xff]
          %v544 = vld [vmem:[%s389 + $0x150] sm:$0xff]
          %v545 = vld [vmem:[%s389 + $0x158] sm:$0xff]
          %v546 = vld [vmem:[%s389 + $0x160] sm:$0xff]
          %v547 = vld [vmem:[%s389 + $0x168] sm:$0xff]
          %v548 = vld [vmem:[%s389 + $0x170] sm:$0xff]
          %v549 = vld [vmem:[%s389 + $0x178] sm:$0xff]
          %v550 = vld [vmem:[%s389 + $0x180] sm:$0xff]
          %v551 = vld [vmem:[%s389 + $0x188] sm:$0xff]
          %v552 = vld [vmem:[%s389 + $0x190] sm:$0xff]
          %v553 = vld [vmem:[%s389 + $0x198] sm:$0xff]
          %v554 = vld [vmem:[%s389 + $0x1a0] sm:$0xff]
          %v555 = vld [vmem:[%s389 + $0x1a8] sm:$0xff]
          %v556 = vld [vmem:[%s389 + $0x1b0] sm:$0xff]
          %v557 = vld [vmem:[%s389 + $0x1b8] sm:$0xff]
          %v558 = vld [vmem:[%s389 + $0x1c0] sm:$0xff]
          %v559 = vld [vmem:[%s389 + $0x1c8] sm:$0xff]
          %v560 = vld [vmem:[%s389 + $0x1d0] sm:$0xff]
          %v561 = vld [vmem:[%s389 + $0x1d8] sm:$0xff]
          %v562 = vld [vmem:[%s389 + $0x1e0] sm:$0xff]
          %v563 = vld [vmem:[%s389 + $0x1e8] sm:$0xff]
          %v564 = vld [vmem:[%s389 + $0x1f0] sm:$0xff]
          %v565 = vld [vmem:[%s389 + $0x1f8] sm:$0xff]
          %v566 = vpack.c.bf16 %v503, %v502
          %v567 = vpack.c.bf16 %v505, %v504
          %v568 = vpack.c.bf16 %v507, %v506
          %v569 = vpack.c.bf16 %v509, %v508
          %v570 = vpack.c.bf16 %v511, %v510
          %v571 = vpack.c.bf16 %v513, %v512
          %v572 = vpack.c.bf16 %v515, %v514
          %v573 = vpack.c.bf16 %v517, %v516
          %v574 = vpack.c.bf16 %v519, %v518
          %v575 = vpack.c.bf16 %v521, %v520
          %v576 = vpack.c.bf16 %v523, %v522
          %v577 = vpack.c.bf16 %v525, %v524
          %v578 = vpack.c.bf16 %v527, %v526
          %v579 = vpack.c.bf16 %v529, %v528
          %v580 = vpack.c.bf16 %v531, %v530
          %v581 = vpack.c.bf16 %v533, %v532
          %v582 = vpack.c.bf16 %v535, %v534
          %v583 = vpack.c.bf16 %v537, %v536
          %v584 = vpack.c.bf16 %v539, %v538
          %v585 = vpack.c.bf16 %v541, %v540
          %v586 = vpack.c.bf16 %v543, %v542
          %v587 = vpack.c.bf16 %v545, %v544
          %v588 = vpack.c.bf16 %v547, %v546
          %v589 = vpack.c.bf16 %v549, %v548
          %v590 = vpack.c.bf16 %v551, %v550
          %v591 = vpack.c.bf16 %v553, %v552
          %v592 = vpack.c.bf16 %v555, %v554
          %v593 = vpack.c.bf16 %v557, %v556
          %v594 = vpack.c.bf16 %v559, %v558
          %v595 = vpack.c.bf16 %v561, %v560
          %v596 = vpack.c.bf16 %v563, %v562
          %v597 = vpack.c.bf16 %v565, %v564
          %v598 = vld [vmem:[%s2] sm:$0xf]
          %v599 = vld [vmem:[%s2 + $0x4] sm:$0xf]
          %v600 = vld [vmem:[%s2 + $0x8] sm:$0xf]
          %v601 = vld [vmem:[%s2 + $0xc] sm:$0xf]
          %v602 = vld [vmem:[%s2 + $0x10] sm:$0xf]
          %v603 = vld [vmem:[%s2 + $0x14] sm:$0xf]
          %v604 = vld [vmem:[%s2 + $0x18] sm:$0xf]
          %v605 = vld [vmem:[%s2 + $0x1c] sm:$0xf]
          %v606 = vld [vmem:[%s3] sm:$0xf]
          %v607 = vld [vmem:[%s3 + $0x4] sm:$0xf]
          %v608 = vld [vmem:[%s3 + $0x8] sm:$0xf]
          %v609 = vld [vmem:[%s3 + $0xc] sm:$0xf]
          %v610 = vld [vmem:[%s3 + $0x10] sm:$0xf]
          %v611 = vld [vmem:[%s3 + $0x14] sm:$0xf]
          %v612 = vld [vmem:[%s3 + $0x18] sm:$0xf]
          %v613 = vld [vmem:[%s3 + $0x1c] sm:$0xf]
          %v622 = vunpack.c.l.b16 %v606
          %v623 = vunpack.c.l.b16 %v607
          %v624 = vunpack.c.l.b16 %v608
          %v625 = vunpack.c.l.b16 %v609
          %v626 = vunpack.c.l.b16 %v610
          %v627 = vunpack.c.l.b16 %v611
          %v628 = vunpack.c.l.b16 %v612
          %v629 = vunpack.c.l.b16 %v613
          %v630 = vpack.c.b16 %v623, %v622
          %v631 = vpack.c.b16 %v625, %v624
          %v632 = vpack.c.b16 %v627, %v626
          %v633 = vpack.c.b16 %v629, %v628
          %vm638 = vcmask 523264
          %v640 = vsel %vm638, %v566, 0
          %v643 = vsel %vm638, %v567, 0
          %v646 = vsel %vm638, %v568, 0
          %v649 = vsel %vm638, %v569, 0
          %v652 = vsel %vm638, %v570, 0
          %v655 = vsel %vm638, %v571, 0
          %v658 = vsel %vm638, %v572, 0
          %v661 = vsel %vm638, %v573, 0
          %v664 = vsel %vm638, %v574, 0
          %v667 = vsel %vm638, %v575, 0
          %v670 = vsel %vm638, %v576, 0
          %v673 = vsel %vm638, %v577, 0
          %v676 = vsel %vm638, %v578, 0
          %v679 = vsel %vm638, %v579, 0
          %v682 = vsel %vm638, %v580, 0
          %v685 = vsel %vm638, %v581, 0
          %v688 = vsel %vm638, %v582, 0
          %v691 = vsel %vm638, %v583, 0
          %v694 = vsel %vm638, %v584, 0
          %v697 = vsel %vm638, %v585, 0
          %v700 = vsel %vm638, %v586, 0
          %v703 = vsel %vm638, %v587, 0
          %v706 = vsel %vm638, %v588, 0
          %v709 = vsel %vm638, %v589, 0
          %v712 = vsel %vm638, %v590, 0
          %v715 = vsel %vm638, %v591, 0
          %v718 = vsel %vm638, %v592, 0
          %v721 = vsel %vm638, %v593, 0
          %v724 = vsel %vm638, %v594, 0
          %v727 = vsel %vm638, %v595, 0
          %v730 = vsel %vm638, %v596, 0
          %v733 = vsel %vm638, %v597, 0
          %735 = vmatprep.subr.bf16.mxu0 0
          %736 = vmatpush1.bf16.msra.mxu0 0
          %737 = vmatprep.subr.bf16.mxu0 0
          %738 = vmatpush1.bf16.msra.mxu0 0
          %739 = vmatprep.subr.bf16.mxu0 0
          %740 = vmatpush1.bf16.msra.mxu0 0
          %741 = vmatprep.subr.bf16.mxu0 0
          %742 = vmatpush1.bf16.msra.mxu0 0
          %743 = vmatprep.subr.bf16.mxu0 0
          %744 = vmatpush1.bf16.msra.mxu0 %v633
          %745 = vmatprep.subr.bf16.mxu0 0
          %746 = vmatpush1.bf16.msra.mxu0 %v632
          %747 = vmatprep.subr.bf16.mxu0 0
          %748 = vmatpush1.bf16.msra.mxu0 %v631
          %749 = vmatprep.subr.bf16.mxu0 0
          %750 = vmatpush1.bf16.msra.mxu0 %v630
          %751 = vmatprep.subr.bf16.mxu0 0
          %752 = vmatpush2.bf16.msra.mxu0 0
          %753 = vmatprep.subr.bf16.mxu0 0
          %754 = vmatpush2.bf16.msra.mxu0 0
          %755 = vmatprep.subr.bf16.mxu0 0
          %756 = vmatpush2.bf16.msra.mxu0 0
          %757 = vmatprep.subr.bf16.mxu0 0
          %758 = vmatpush2.bf16.msra.mxu0 0
          %759 = vmatprep.subr.bf16.mxu0 0
          %760 = vmatpush2.bf16.msra.mxu0 0
          %761 = vmatprep.subr.bf16.mxu0 0
          %762 = vmatpush2.bf16.msra.mxu0 0
          %763 = vmatprep.subr.bf16.mxu0 0
          %764 = vmatpush2.bf16.msra.mxu0 0
          %765 = vmatprep.subr.bf16.mxu0 0
          %766 = vmatpush2.bf16.msra.mxu0 0
          %767 = vmatprep.mubr.bf16.mxu0 0
          %768 = vmatmul.mubr.bf16.gmra.mxu0 %v640
          %v769 = vpop.f32.mrf.mxu0
          %v770 = vadd.f32 0.0, %v769
          %v771 = vpop.f32.mrf.mxu0
          %v772 = vpop.f32.mrf.mxu0
          %v773 = vadd.f32 0.0, %v772
          %v774 = vpop.f32.mrf.mxu0
          %775 = vmatprep.mubr.bf16.mxu0 0
          %776 = vmatmul.mubr.bf16.gmra.mxu0 %v643
          %v777 = vpop.f32.mrf.mxu0
          %v778 = vadd.f32 0.0, %v777
          %v779 = vpop.f32.mrf.mxu0
          %v780 = vpop.f32.mrf.mxu0
          %v781 = vadd.f32 0.0, %v780
          %v782 = vpop.f32.mrf.mxu0
          %783 = vmatprep.mubr.bf16.mxu0 0
          %784 = vmatmul.mubr.bf16.gmra.mxu0 %v646
          %v785 = vpop.f32.mrf.mxu0
          %v786 = vadd.f32 0.0, %v785
          %v787 = vpop.f32.mrf.mxu0
          %v788 = vpop.f32.mrf.mxu0
          %v789 = vadd.f32 0.0, %v788
          %v790 = vpop.f32.mrf.mxu0
          %791 = vmatprep.mubr.bf16.mxu0 0
          %792 = vmatmul.mubr.bf16.gmra.mxu0 %v649
          %v793 = vpop.f32.mrf.mxu0
          %v794 = vadd.f32 0.0, %v793
          %v795 = vpop.f32.mrf.mxu0
          %v796 = vpop.f32.mrf.mxu0
          %v797 = vadd.f32 0.0, %v796
          %v798 = vpop.f32.mrf.mxu0
          %799 = vmatprep.mubr.bf16.mxu0 0
          %800 = vmatmul.mubr.bf16.gmra.mxu0 %v652
          %v801 = vpop.f32.mrf.mxu0
          %v802 = vadd.f32 0.0, %v801
          %v803 = vpop.f32.mrf.mxu0
          %v804 = vpop.f32.mrf.mxu0
          %v805 = vadd.f32 0.0, %v804
          %v806 = vpop.f32.mrf.mxu0
          %807 = vmatprep.mubr.bf16.mxu0 0
          %808 = vmatmul.mubr.bf16.gmra.mxu0 %v655
          %v809 = vpop.f32.mrf.mxu0
          %v810 = vadd.f32 0.0, %v809
          %v811 = vpop.f32.mrf.mxu0
          %v812 = vpop.f32.mrf.mxu0
          %v813 = vadd.f32 0.0, %v812
          %v814 = vpop.f32.mrf.mxu0
          %815 = vmatprep.mubr.bf16.mxu0 0
          %816 = vmatmul.mubr.bf16.gmra.mxu0 %v658
          %v817 = vpop.f32.mrf.mxu0
          %v818 = vadd.f32 0.0, %v817
          %v819 = vpop.f32.mrf.mxu0
          %v820 = vpop.f32.mrf.mxu0
          %v821 = vadd.f32 0.0, %v820
          %v822 = vpop.f32.mrf.mxu0
          %823 = vmatprep.mubr.bf16.mxu0 0
          %824 = vmatmul.mubr.bf16.gmra.mxu0 %v661
          %v825 = vpop.f32.mrf.mxu0
          %v826 = vadd.f32 0.0, %v825
          %v827 = vpop.f32.mrf.mxu0
          %v828 = vpop.f32.mrf.mxu0
          %v829 = vadd.f32 0.0, %v828
          %v830 = vpop.f32.mrf.mxu0
          %831 = vmatprep.mubr.bf16.mxu0 0
          %832 = vmatmul.mubr.bf16.gmra.mxu0 %v664
          %v833 = vpop.f32.mrf.mxu0
          %v834 = vadd.f32 0.0, %v833
          %v835 = vpop.f32.mrf.mxu0
          %v836 = vpop.f32.mrf.mxu0
          %v837 = vadd.f32 0.0, %v836
          %v838 = vpop.f32.mrf.mxu0
          %839 = vmatprep.mubr.bf16.mxu0 0
          %840 = vmatmul.mubr.bf16.gmra.mxu0 %v667
          %v841 = vpop.f32.mrf.mxu0
          %v842 = vadd.f32 0.0, %v841
          %v843 = vpop.f32.mrf.mxu0
          %v844 = vpop.f32.mrf.mxu0
          %v845 = vadd.f32 0.0, %v844
          %v846 = vpop.f32.mrf.mxu0
          %847 = vmatprep.mubr.bf16.mxu0 0
          %848 = vmatmul.mubr.bf16.gmra.mxu0 %v670
          %v849 = vpop.f32.mrf.mxu0
          %v850 = vadd.f32 0.0, %v849
          %v851 = vpop.f32.mrf.mxu0
          %v852 = vpop.f32.mrf.mxu0
          %v853 = vadd.f32 0.0, %v852
          %v854 = vpop.f32.mrf.mxu0
          %855 = vmatprep.mubr.bf16.mxu0 0
          %856 = vmatmul.mubr.bf16.gmra.mxu0 %v673
          %v857 = vpop.f32.mrf.mxu0
          %v858 = vadd.f32 0.0, %v857
          %v859 = vpop.f32.mrf.mxu0
          %v860 = vpop.f32.mrf.mxu0
          %v861 = vadd.f32 0.0, %v860
          %v862 = vpop.f32.mrf.mxu0
          %863 = vmatprep.mubr.bf16.mxu0 0
          %864 = vmatmul.mubr.bf16.gmra.mxu0 %v676
          %v865 = vpop.f32.mrf.mxu0
          %v866 = vadd.f32 0.0, %v865
          %v867 = vpop.f32.mrf.mxu0
          %v868 = vpop.f32.mrf.mxu0
          %v869 = vadd.f32 0.0, %v868
          %v870 = vpop.f32.mrf.mxu0
          %871 = vmatprep.mubr.bf16.mxu0 0
          %872 = vmatmul.mubr.bf16.gmra.mxu0 %v679
          %v873 = vpop.f32.mrf.mxu0
          %v874 = vadd.f32 0.0, %v873
          %v875 = vpop.f32.mrf.mxu0
          %v876 = vpop.f32.mrf.mxu0
          %v877 = vadd.f32 0.0, %v876
          %v878 = vpop.f32.mrf.mxu0
          %879 = vmatprep.mubr.bf16.mxu0 0
          %880 = vmatmul.mubr.bf16.gmra.mxu0 %v682
          %v881 = vpop.f32.mrf.mxu0
          %v882 = vadd.f32 0.0, %v881
          %v883 = vpop.f32.mrf.mxu0
          %v884 = vpop.f32.mrf.mxu0
          %v885 = vadd.f32 0.0, %v884
          %v886 = vpop.f32.mrf.mxu0
          %887 = vmatprep.mubr.bf16.mxu0 0
          %888 = vmatmul.mubr.bf16.gmra.mxu0 %v685
          %v889 = vpop.f32.mrf.mxu0
          %v890 = vadd.f32 0.0, %v889
          %v891 = vpop.f32.mrf.mxu0
          %v892 = vpop.f32.mrf.mxu0
          %v893 = vadd.f32 0.0, %v892
          %v894 = vpop.f32.mrf.mxu0
          %895 = vmatprep.mubr.bf16.mxu0 0
          %896 = vmatmul.mubr.bf16.gmra.mxu0 %v688
          %v897 = vpop.f32.mrf.mxu0
          %v898 = vadd.f32 0.0, %v897
          %v899 = vpop.f32.mrf.mxu0
          %v900 = vpop.f32.mrf.mxu0
          %v901 = vadd.f32 0.0, %v900
          %v902 = vpop.f32.mrf.mxu0
          %903 = vmatprep.mubr.bf16.mxu0 0
          %904 = vmatmul.mubr.bf16.gmra.mxu0 %v691
          %v905 = vpop.f32.mrf.mxu0
          %v906 = vadd.f32 0.0, %v905
          %v907 = vpop.f32.mrf.mxu0
          %v908 = vpop.f32.mrf.mxu0
          %v909 = vadd.f32 0.0, %v908
          %v910 = vpop.f32.mrf.mxu0
          %911 = vmatprep.mubr.bf16.mxu0 0
          %912 = vmatmul.mubr.bf16.gmra.mxu0 %v694
          %v913 = vpop.f32.mrf.mxu0
          %v914 = vadd.f32 0.0, %v913
          %v915 = vpop.f32.mrf.mxu0
          %v916 = vpop.f32.mrf.mxu0
          %v917 = vadd.f32 0.0, %v916
          %v918 = vpop.f32.mrf.mxu0
          %919 = vmatprep.mubr.bf16.mxu0 0
          %920 = vmatmul.mubr.bf16.gmra.mxu0 %v697
          %v921 = vpop.f32.mrf.mxu0
          %v922 = vadd.f32 0.0, %v921
          %v923 = vpop.f32.mrf.mxu0
          %v924 = vpop.f32.mrf.mxu0
          %v925 = vadd.f32 0.0, %v924
          %v926 = vpop.f32.mrf.mxu0
          %927 = vmatprep.mubr.bf16.mxu0 0
          %928 = vmatmul.mubr.bf16.gmra.mxu0 %v700
          %v929 = vpop.f32.mrf.mxu0
          %v930 = vadd.f32 0.0, %v929
          %v931 = vpop.f32.mrf.mxu0
          %v932 = vpop.f32.mrf.mxu0
          %v933 = vadd.f32 0.0, %v932
          %v934 = vpop.f32.mrf.mxu0
          %935 = vmatprep.mubr.bf16.mxu0 0
          %936 = vmatmul.mubr.bf16.gmra.mxu0 %v703
          %v937 = vpop.f32.mrf.mxu0
          %v938 = vadd.f32 0.0, %v937
          %v939 = vpop.f32.mrf.mxu0
          %v940 = vpop.f32.mrf.mxu0
          %v941 = vadd.f32 0.0, %v940
          %v942 = vpop.f32.mrf.mxu0
          %943 = vmatprep.mubr.bf16.mxu0 0
          %944 = vmatmul.mubr.bf16.gmra.mxu0 %v706
          %v945 = vpop.f32.mrf.mxu0
          %v946 = vadd.f32 0.0, %v945
          %v947 = vpop.f32.mrf.mxu0
          %v948 = vpop.f32.mrf.mxu0
          %v949 = vadd.f32 0.0, %v948
          %v950 = vpop.f32.mrf.mxu0
          %951 = vmatprep.mubr.bf16.mxu0 0
          %952 = vmatmul.mubr.bf16.gmra.mxu0 %v709
          %v953 = vpop.f32.mrf.mxu0
          %v954 = vadd.f32 0.0, %v953
          %v955 = vpop.f32.mrf.mxu0
          %v956 = vpop.f32.mrf.mxu0
          %v957 = vadd.f32 0.0, %v956
          %v958 = vpop.f32.mrf.mxu0
          %959 = vmatprep.mubr.bf16.mxu0 0
          %960 = vmatmul.mubr.bf16.gmra.mxu0 %v712
          %v961 = vpop.f32.mrf.mxu0
          %v962 = vadd.f32 0.0, %v961
          %v963 = vpop.f32.mrf.mxu0
          %v964 = vpop.f32.mrf.mxu0
          %v965 = vadd.f32 0.0, %v964
          %v966 = vpop.f32.mrf.mxu0
          %967 = vmatprep.mubr.bf16.mxu0 0
          %968 = vmatmul.mubr.bf16.gmra.mxu0 %v715
          %v969 = vpop.f32.mrf.mxu0
          %v970 = vadd.f32 0.0, %v969
          %v971 = vpop.f32.mrf.mxu0
          %v972 = vpop.f32.mrf.mxu0
          %v973 = vadd.f32 0.0, %v972
          %v974 = vpop.f32.mrf.mxu0
          %975 = vmatprep.mubr.bf16.mxu0 0
          %976 = vmatmul.mubr.bf16.gmra.mxu0 %v718
          %v977 = vpop.f32.mrf.mxu0
          %v978 = vadd.f32 0.0, %v977
          %v979 = vpop.f32.mrf.mxu0
          %v980 = vpop.f32.mrf.mxu0
          %v981 = vadd.f32 0.0, %v980
          %v982 = vpop.f32.mrf.mxu0
          %983 = vmatprep.mubr.bf16.mxu0 0
          %984 = vmatmul.mubr.bf16.gmra.mxu0 %v721
          %v985 = vpop.f32.mrf.mxu0
          %v986 = vadd.f32 0.0, %v985
          %v987 = vpop.f32.mrf.mxu0
          %v988 = vpop.f32.mrf.mxu0
          %v989 = vadd.f32 0.0, %v988
          %v990 = vpop.f32.mrf.mxu0
          %991 = vmatprep.mubr.bf16.mxu0 0
          %992 = vmatmul.mubr.bf16.gmra.mxu0 %v724
          %v993 = vpop.f32.mrf.mxu0
          %v994 = vadd.f32 0.0, %v993
          %v995 = vpop.f32.mrf.mxu0
          %v996 = vpop.f32.mrf.mxu0
          %v997 = vadd.f32 0.0, %v996
          %v998 = vpop.f32.mrf.mxu0
          %999 = vmatprep.mubr.bf16.mxu0 0
          %1000 = vmatmul.mubr.bf16.gmra.mxu0 %v727
          %v1001 = vpop.f32.mrf.mxu0
          %v1002 = vadd.f32 0.0, %v1001
          %v1003 = vpop.f32.mrf.mxu0
          %v1004 = vpop.f32.mrf.mxu0
          %v1005 = vadd.f32 0.0, %v1004
          %v1006 = vpop.f32.mrf.mxu0
          %1007 = vmatprep.mubr.bf16.mxu0 0
          %1008 = vmatmul.mubr.bf16.gmra.mxu0 %v730
          %v1009 = vpop.f32.mrf.mxu0
          %v1010 = vadd.f32 0.0, %v1009
          %v1011 = vpop.f32.mrf.mxu0
          %v1012 = vpop.f32.mrf.mxu0
          %v1013 = vadd.f32 0.0, %v1012
          %v1014 = vpop.f32.mrf.mxu0
          %1015 = vmatprep.mubr.bf16.mxu0 0
          %1016 = vmatmul.mubr.bf16.gmra.mxu0 %v733
          %v1017 = vpop.f32.mrf.mxu0
          %v1018 = vadd.f32 0.0, %v1017
          %v1019 = vpop.f32.mrf.mxu0
          %v1020 = vpop.f32.mrf.mxu0
          %v1021 = vadd.f32 0.0, %v1020
          %v1022 = vpop.f32.mrf.mxu0
          %1023 = vdwg.mxu0
          %v1032 = vunpack.c.l.b16 %v598
          %v1033 = vunpack.c.l.b16 %v599
          %v1034 = vunpack.c.l.b16 %v600
          %v1035 = vunpack.c.l.b16 %v601
          %v1036 = vunpack.c.l.b16 %v602
          %v1037 = vunpack.c.l.b16 %v603
          %v1038 = vunpack.c.l.b16 %v604
          %v1039 = vunpack.c.l.b16 %v605
          %v1040 = vpack.c.b16 %v1033, %v1032
          %v1041 = vpack.c.b16 %v1035, %v1034
          %v1042 = vpack.c.b16 %v1037, %v1036
          %v1043 = vpack.c.b16 %v1039, %v1038
          %v1049 = vsel %vm638, %v470, 0
          %v1052 = vsel %vm638, %v471, 0
          %v1055 = vsel %vm638, %v472, 0
          %v1058 = vsel %vm638, %v473, 0
          %v1061 = vsel %vm638, %v474, 0
          %v1064 = vsel %vm638, %v475, 0
          %v1067 = vsel %vm638, %v476, 0
          %v1070 = vsel %vm638, %v477, 0
          %v1073 = vsel %vm638, %v478, 0
          %v1076 = vsel %vm638, %v479, 0
          %v1079 = vsel %vm638, %v480, 0
          %v1082 = vsel %vm638, %v481, 0
          %v1085 = vsel %vm638, %v482, 0
          %v1088 = vsel %vm638, %v483, 0
          %v1091 = vsel %vm638, %v484, 0
          %v1094 = vsel %vm638, %v485, 0
          %v1097 = vsel %vm638, %v486, 0
          %v1100 = vsel %vm638, %v487, 0
          %v1103 = vsel %vm638, %v488, 0
          %v1106 = vsel %vm638, %v489, 0
          %v1109 = vsel %vm638, %v490, 0
          %v1112 = vsel %vm638, %v491, 0
          %v1115 = vsel %vm638, %v492, 0
          %v1118 = vsel %vm638, %v493, 0
          %v1121 = vsel %vm638, %v494, 0
          %v1124 = vsel %vm638, %v495, 0
          %v1127 = vsel %vm638, %v496, 0
          %v1130 = vsel %vm638, %v497, 0
          %v1133 = vsel %vm638, %v498, 0
          %v1136 = vsel %vm638, %v499, 0
          %v1139 = vsel %vm638, %v500, 0
          %v1142 = vsel %vm638, %v501, 0
          %1144 = vmatprep.subr.bf16.mxu0 0
          %1145 = vmatpush1.bf16.msra.mxu0 0
          %1146 = vmatprep.subr.bf16.mxu0 0
          %1147 = vmatpush1.bf16.msra.mxu0 0
          %1148 = vmatprep.subr.bf16.mxu0 0
          %1149 = vmatpush1.bf16.msra.mxu0 0
          %1150 = vmatprep.subr.bf16.mxu0 0
          %1151 = vmatpush1.bf16.msra.mxu0 0
          %1152 = vmatprep.subr.bf16.mxu0 0
          %1153 = vmatpush1.bf16.msra.mxu0 %v1043
          %1154 = vmatprep.subr.bf16.mxu0 0
          %1155 = vmatpush1.bf16.msra.mxu0 %v1042
          %1156 = vmatprep.subr.bf16.mxu0 0
          %1157 = vmatpush1.bf16.msra.mxu0 %v1041
          %1158 = vmatprep.subr.bf16.mxu0 0
          %1159 = vmatpush1.bf16.msra.mxu0 %v1040
          %1160 = vmatprep.subr.bf16.mxu0 0
          %1161 = vmatpush2.bf16.msra.mxu0 0
          %1162 = vmatprep.subr.bf16.mxu0 0
          %1163 = vmatpush2.bf16.msra.mxu0 0
          %1164 = vmatprep.subr.bf16.mxu0 0
          %1165 = vmatpush2.bf16.msra.mxu0 0
          %1166 = vmatprep.subr.bf16.mxu0 0
          %1167 = vmatpush2.bf16.msra.mxu0 0
          %1168 = vmatprep.subr.bf16.mxu0 0
          %1169 = vmatpush2.bf16.msra.mxu0 0
          %1170 = vmatprep.subr.bf16.mxu0 0
          %1171 = vmatpush2.bf16.msra.mxu0 0
          %1172 = vmatprep.subr.bf16.mxu0 0
          %1173 = vmatpush2.bf16.msra.mxu0 0
          %1174 = vmatprep.subr.bf16.mxu0 0
          %1175 = vmatpush2.bf16.msra.mxu0 0
          %1176 = vmatprep.mubr.bf16.mxu0 0
          %1177 = vmatmul.mubr.bf16.gmra.mxu0 %v1049
          %v1178 = vpop.f32.mrf.mxu0
          %v1179 = vadd.f32 %v770, %v1178
          %v1180 = vpop.f32.mrf.mxu0
          %v1181 = vpop.f32.mrf.mxu0
          %v1182 = vadd.f32 %v773, %v1181
          %v1183 = vpop.f32.mrf.mxu0
          %1184 = vmatprep.mubr.bf16.mxu0 0
          %1185 = vmatmul.mubr.bf16.gmra.mxu0 %v1052
          %v1186 = vpop.f32.mrf.mxu0
          %v1187 = vadd.f32 %v778, %v1186
          %v1188 = vpop.f32.mrf.mxu0
          %v1189 = vpop.f32.mrf.mxu0
          %v1190 = vadd.f32 %v781, %v1189
          %v1191 = vpop.f32.mrf.mxu0
          %1192 = vmatprep.mubr.bf16.mxu0 0
          %1193 = vmatmul.mubr.bf16.gmra.mxu0 %v1055
          %v1194 = vpop.f32.mrf.mxu0
          %v1195 = vadd.f32 %v786, %v1194
          %v1196 = vpop.f32.mrf.mxu0
          %v1197 = vpop.f32.mrf.mxu0
          %v1198 = vadd.f32 %v789, %v1197
          %v1199 = vpop.f32.mrf.mxu0
          %1200 = vmatprep.mubr.bf16.mxu0 0
          %1201 = vmatmul.mubr.bf16.gmra.mxu0 %v1058
          %v1202 = vpop.f32.mrf.mxu0
          %v1203 = vadd.f32 %v794, %v1202
          %v1204 = vpop.f32.mrf.mxu0
          %v1205 = vpop.f32.mrf.mxu0
          %v1206 = vadd.f32 %v797, %v1205
          %v1207 = vpop.f32.mrf.mxu0
          %1208 = vmatprep.mubr.bf16.mxu0 0
          %1209 = vmatmul.mubr.bf16.gmra.mxu0 %v1061
          %v1210 = vpop.f32.mrf.mxu0
          %v1211 = vadd.f32 %v802, %v1210
          %v1212 = vpop.f32.mrf.mxu0
          %v1213 = vpop.f32.mrf.mxu0
          %v1214 = vadd.f32 %v805, %v1213
          %v1215 = vpop.f32.mrf.mxu0
          %1216 = vmatprep.mubr.bf16.mxu0 0
          %1217 = vmatmul.mubr.bf16.gmra.mxu0 %v1064
          %v1218 = vpop.f32.mrf.mxu0
          %v1219 = vadd.f32 %v810, %v1218
          %v1220 = vpop.f32.mrf.mxu0
          %v1221 = vpop.f32.mrf.mxu0
          %v1222 = vadd.f32 %v813, %v1221
          %v1223 = vpop.f32.mrf.mxu0
          %1224 = vmatprep.mubr.bf16.mxu0 0
          %1225 = vmatmul.mubr.bf16.gmra.mxu0 %v1067
          %v1226 = vpop.f32.mrf.mxu0
          %v1227 = vadd.f32 %v818, %v1226
          %v1228 = vpop.f32.mrf.mxu0
          %v1229 = vpop.f32.mrf.mxu0
          %v1230 = vadd.f32 %v821, %v1229
          %v1231 = vpop.f32.mrf.mxu0
          %1232 = vmatprep.mubr.bf16.mxu0 0
          %1233 = vmatmul.mubr.bf16.gmra.mxu0 %v1070
          %v1234 = vpop.f32.mrf.mxu0
          %v1235 = vadd.f32 %v826, %v1234
          %v1236 = vpop.f32.mrf.mxu0
          %v1237 = vpop.f32.mrf.mxu0
          %v1238 = vadd.f32 %v829, %v1237
          %v1239 = vpop.f32.mrf.mxu0
          %1240 = vmatprep.mubr.bf16.mxu0 0
          %1241 = vmatmul.mubr.bf16.gmra.mxu0 %v1073
          %v1242 = vpop.f32.mrf.mxu0
          %v1243 = vadd.f32 %v834, %v1242
          %v1244 = vpop.f32.mrf.mxu0
          %v1245 = vpop.f32.mrf.mxu0
          %v1246 = vadd.f32 %v837, %v1245
          %v1247 = vpop.f32.mrf.mxu0
          %1248 = vmatprep.mubr.bf16.mxu0 0
          %1249 = vmatmul.mubr.bf16.gmra.mxu0 %v1076
          %v1250 = vpop.f32.mrf.mxu0
          %v1251 = vadd.f32 %v842, %v1250
          %v1252 = vpop.f32.mrf.mxu0
          %v1253 = vpop.f32.mrf.mxu0
          %v1254 = vadd.f32 %v845, %v1253
          %v1255 = vpop.f32.mrf.mxu0
          %1256 = vmatprep.mubr.bf16.mxu0 0
          %1257 = vmatmul.mubr.bf16.gmra.mxu0 %v1079
          %v1258 = vpop.f32.mrf.mxu0
          %v1259 = vadd.f32 %v850, %v1258
          %v1260 = vpop.f32.mrf.mxu0
          %v1261 = vpop.f32.mrf.mxu0
          %v1262 = vadd.f32 %v853, %v1261
          %v1263 = vpop.f32.mrf.mxu0
          %1264 = vmatprep.mubr.bf16.mxu0 0
          %1265 = vmatmul.mubr.bf16.gmra.mxu0 %v1082
          %v1266 = vpop.f32.mrf.mxu0
          %v1267 = vadd.f32 %v858, %v1266
          %v1268 = vpop.f32.mrf.mxu0
          %v1269 = vpop.f32.mrf.mxu0
          %v1270 = vadd.f32 %v861, %v1269
          %v1271 = vpop.f32.mrf.mxu0
          %1272 = vmatprep.mubr.bf16.mxu0 0
          %1273 = vmatmul.mubr.bf16.gmra.mxu0 %v1085
          %v1274 = vpop.f32.mrf.mxu0
          %v1275 = vadd.f32 %v866, %v1274
          %v1276 = vpop.f32.mrf.mxu0
          %v1277 = vpop.f32.mrf.mxu0
          %v1278 = vadd.f32 %v869, %v1277
          %v1279 = vpop.f32.mrf.mxu0
          %1280 = vmatprep.mubr.bf16.mxu0 0
          %1281 = vmatmul.mubr.bf16.gmra.mxu0 %v1088
          %v1282 = vpop.f32.mrf.mxu0
          %v1283 = vadd.f32 %v874, %v1282
          %v1284 = vpop.f32.mrf.mxu0
          %v1285 = vpop.f32.mrf.mxu0
          %v1286 = vadd.f32 %v877, %v1285
          %v1287 = vpop.f32.mrf.mxu0
          %1288 = vmatprep.mubr.bf16.mxu0 0
          %1289 = vmatmul.mubr.bf16.gmra.mxu0 %v1091
          %v1290 = vpop.f32.mrf.mxu0
          %v1291 = vadd.f32 %v882, %v1290
          %v1292 = vpop.f32.mrf.mxu0
          %v1293 = vpop.f32.mrf.mxu0
          %v1294 = vadd.f32 %v885, %v1293
          %v1295 = vpop.f32.mrf.mxu0
          %1296 = vmatprep.mubr.bf16.mxu0 0
          %1297 = vmatmul.mubr.bf16.gmra.mxu0 %v1094
          %v1298 = vpop.f32.mrf.mxu0
          %v1299 = vadd.f32 %v890, %v1298
          %v1300 = vpop.f32.mrf.mxu0
          %v1301 = vpop.f32.mrf.mxu0
          %v1302 = vadd.f32 %v893, %v1301
          %v1303 = vpop.f32.mrf.mxu0
          %1304 = vmatprep.mubr.bf16.mxu0 0
          %1305 = vmatmul.mubr.bf16.gmra.mxu0 %v1097
          %v1306 = vpop.f32.mrf.mxu0
          %v1307 = vadd.f32 %v898, %v1306
          %v1308 = vpop.f32.mrf.mxu0
          %v1309 = vpop.f32.mrf.mxu0
          %v1310 = vadd.f32 %v901, %v1309
          %v1311 = vpop.f32.mrf.mxu0
          %1312 = vmatprep.mubr.bf16.mxu0 0
          %1313 = vmatmul.mubr.bf16.gmra.mxu0 %v1100
          %v1314 = vpop.f32.mrf.mxu0
          %v1315 = vadd.f32 %v906, %v1314
          %v1316 = vpop.f32.mrf.mxu0
          %v1317 = vpop.f32.mrf.mxu0
          %v1318 = vadd.f32 %v909, %v1317
          %v1319 = vpop.f32.mrf.mxu0
          %1320 = vmatprep.mubr.bf16.mxu0 0
          %1321 = vmatmul.mubr.bf16.gmra.mxu0 %v1103
          %v1322 = vpop.f32.mrf.mxu0
          %v1323 = vadd.f32 %v914, %v1322
          %v1324 = vpop.f32.mrf.mxu0
          %v1325 = vpop.f32.mrf.mxu0
          %v1326 = vadd.f32 %v917, %v1325
          %v1327 = vpop.f32.mrf.mxu0
          %1328 = vmatprep.mubr.bf16.mxu0 0
          %1329 = vmatmul.mubr.bf16.gmra.mxu0 %v1106
          %v1330 = vpop.f32.mrf.mxu0
          %v1331 = vadd.f32 %v922, %v1330
          %v1332 = vpop.f32.mrf.mxu0
          %v1333 = vpop.f32.mrf.mxu0
          %v1334 = vadd.f32 %v925, %v1333
          %v1335 = vpop.f32.mrf.mxu0
          %1336 = vmatprep.mubr.bf16.mxu0 0
          %1337 = vmatmul.mubr.bf16.gmra.mxu0 %v1109
          %v1338 = vpop.f32.mrf.mxu0
          %v1339 = vadd.f32 %v930, %v1338
          %v1340 = vpop.f32.mrf.mxu0
          %v1341 = vpop.f32.mrf.mxu0
          %v1342 = vadd.f32 %v933, %v1341
          %v1343 = vpop.f32.mrf.mxu0
          %1344 = vmatprep.mubr.bf16.mxu0 0
          %1345 = vmatmul.mubr.bf16.gmra.mxu0 %v1112
          %v1346 = vpop.f32.mrf.mxu0
          %v1347 = vadd.f32 %v938, %v1346
          %v1348 = vpop.f32.mrf.mxu0
          %v1349 = vpop.f32.mrf.mxu0
          %v1350 = vadd.f32 %v941, %v1349
          %v1351 = vpop.f32.mrf.mxu0
          %1352 = vmatprep.mubr.bf16.mxu0 0
          %1353 = vmatmul.mubr.bf16.gmra.mxu0 %v1115
          %v1354 = vpop.f32.mrf.mxu0
          %v1355 = vadd.f32 %v946, %v1354
          %v1356 = vpop.f32.mrf.mxu0
          %v1357 = vpop.f32.mrf.mxu0
          %v1358 = vadd.f32 %v949, %v1357
          %v1359 = vpop.f32.mrf.mxu0
          %1360 = vmatprep.mubr.bf16.mxu0 0
          %1361 = vmatmul.mubr.bf16.gmra.mxu0 %v1118
          %v1362 = vpop.f32.mrf.mxu0
          %v1363 = vadd.f32 %v954, %v1362
          %v1364 = vpop.f32.mrf.mxu0
          %v1365 = vpop.f32.mrf.mxu0
          %v1366 = vadd.f32 %v957, %v1365
          %v1367 = vpop.f32.mrf.mxu0
          %1368 = vmatprep.mubr.bf16.mxu0 0
          %1369 = vmatmul.mubr.bf16.gmra.mxu0 %v1121
          %v1370 = vpop.f32.mrf.mxu0
          %v1371 = vadd.f32 %v962, %v1370
          %v1372 = vpop.f32.mrf.mxu0
          %v1373 = vpop.f32.mrf.mxu0
          %v1374 = vadd.f32 %v965, %v1373
          %v1375 = vpop.f32.mrf.mxu0
          %1376 = vmatprep.mubr.bf16.mxu0 0
          %1377 = vmatmul.mubr.bf16.gmra.mxu0 %v1124
          %v1378 = vpop.f32.mrf.mxu0
          %v1379 = vadd.f32 %v970, %v1378
          %v1380 = vpop.f32.mrf.mxu0
          %v1381 = vpop.f32.mrf.mxu0
          %v1382 = vadd.f32 %v973, %v1381
          %v1383 = vpop.f32.mrf.mxu0
          %1384 = vmatprep.mubr.bf16.mxu0 0
          %1385 = vmatmul.mubr.bf16.gmra.mxu0 %v1127
          %v1386 = vpop.f32.mrf.mxu0
          %v1387 = vadd.f32 %v978, %v1386
          %v1388 = vpop.f32.mrf.mxu0
          %v1389 = vpop.f32.mrf.mxu0
          %v1390 = vadd.f32 %v981, %v1389
          %v1391 = vpop.f32.mrf.mxu0
          %1392 = vmatprep.mubr.bf16.mxu0 0
          %1393 = vmatmul.mubr.bf16.gmra.mxu0 %v1130
          %v1394 = vpop.f32.mrf.mxu0
          %v1395 = vadd.f32 %v986, %v1394
          %v1396 = vpop.f32.mrf.mxu0
          %v1397 = vpop.f32.mrf.mxu0
          %v1398 = vadd.f32 %v989, %v1397
          %v1399 = vpop.f32.mrf.mxu0
          %1400 = vmatprep.mubr.bf16.mxu0 0
          %1401 = vmatmul.mubr.bf16.gmra.mxu0 %v1133
          %v1402 = vpop.f32.mrf.mxu0
          %v1403 = vadd.f32 %v994, %v1402
          %v1404 = vpop.f32.mrf.mxu0
          %v1405 = vpop.f32.mrf.mxu0
          %v1406 = vadd.f32 %v997, %v1405
          %v1407 = vpop.f32.mrf.mxu0
          %1408 = vmatprep.mubr.bf16.mxu0 0
          %1409 = vmatmul.mubr.bf16.gmra.mxu0 %v1136
          %v1410 = vpop.f32.mrf.mxu0
          %v1411 = vadd.f32 %v1002, %v1410
          %v1412 = vpop.f32.mrf.mxu0
          %v1413 = vpop.f32.mrf.mxu0
          %v1414 = vadd.f32 %v1005, %v1413
          %v1415 = vpop.f32.mrf.mxu0
          %1416 = vmatprep.mubr.bf16.mxu0 0
          %1417 = vmatmul.mubr.bf16.gmra.mxu0 %v1139
          %v1418 = vpop.f32.mrf.mxu0
          %v1419 = vadd.f32 %v1010, %v1418
          %v1420 = vpop.f32.mrf.mxu0
          %v1421 = vpop.f32.mrf.mxu0
          %v1422 = vadd.f32 %v1013, %v1421
          %v1423 = vpop.f32.mrf.mxu0
          %1424 = vmatprep.mubr.bf16.mxu0 0
          %1425 = vmatmul.mubr.bf16.gmra.mxu0 %v1142
          %v1426 = vpop.f32.mrf.mxu0
          %v1427 = vadd.f32 %v1018, %v1426
          %v1428 = vpop.f32.mrf.mxu0
          %v1429 = vpop.f32.mrf.mxu0
          %v1430 = vadd.f32 %v1021, %v1429
          %v1431 = vpop.f32.mrf.mxu0
          %1432 = vdwg.mxu0
          %v1433 = vld [vmem:[%s4] sm:$0x1]
          %v1435 = vlaneseq
          %v1436 = vshrl.u32 %v1435, 7
          %v1437 = vsub.s32 0, %v1436
          %v1438 = vrot.slane %v1433, %v1437
          %v1440 = vadd.f32 %v1179, %v1438
          %v1441 = vadd.f32 %v1182, %v1438
          %v1442 = vadd.f32 %v1187, %v1438
          %v1443 = vadd.f32 %v1190, %v1438
          %v1444 = vadd.f32 %v1195, %v1438
          %v1445 = vadd.f32 %v1198, %v1438
          %v1446 = vadd.f32 %v1203, %v1438
          %v1447 = vadd.f32 %v1206, %v1438
          %v1448 = vadd.f32 %v1211, %v1438
          %v1449 = vadd.f32 %v1214, %v1438
          %v1450 = vadd.f32 %v1219, %v1438
          %v1451 = vadd.f32 %v1222, %v1438
          %v1452 = vadd.f32 %v1227, %v1438
          %v1453 = vadd.f32 %v1230, %v1438
          %v1454 = vadd.f32 %v1235, %v1438
          %v1455 = vadd.f32 %v1238, %v1438
          %v1456 = vadd.f32 %v1243, %v1438
          %v1457 = vadd.f32 %v1246, %v1438
          %v1458 = vadd.f32 %v1251, %v1438
          %v1459 = vadd.f32 %v1254, %v1438
          %v1460 = vadd.f32 %v1259, %v1438
          %v1461 = vadd.f32 %v1262, %v1438
          %v1462 = vadd.f32 %v1267, %v1438
          %v1463 = vadd.f32 %v1270, %v1438
          %v1464 = vadd.f32 %v1275, %v1438
          %v1465 = vadd.f32 %v1278, %v1438
          %v1466 = vadd.f32 %v1283, %v1438
          %v1467 = vadd.f32 %v1286, %v1438
          %v1468 = vadd.f32 %v1291, %v1438
          %v1469 = vadd.f32 %v1294, %v1438
          %v1470 = vadd.f32 %v1299, %v1438
          %v1471 = vadd.f32 %v1302, %v1438
          %v1472 = vadd.f32 %v1307, %v1438
          %v1473 = vadd.f32 %v1310, %v1438
          %v1474 = vadd.f32 %v1315, %v1438
          %v1475 = vadd.f32 %v1318, %v1438
          %v1476 = vadd.f32 %v1323, %v1438
          %v1477 = vadd.f32 %v1326, %v1438
          %v1478 = vadd.f32 %v1331, %v1438
          %v1479 = vadd.f32 %v1334, %v1438
          %v1480 = vadd.f32 %v1339, %v1438
          %v1481 = vadd.f32 %v1342, %v1438
          %v1482 = vadd.f32 %v1347, %v1438
          %v1483 = vadd.f32 %v1350, %v1438
          %v1484 = vadd.f32 %v1355, %v1438
          %v1485 = vadd.f32 %v1358, %v1438
          %v1486 = vadd.f32 %v1363, %v1438
          %v1487 = vadd.f32 %v1366, %v1438
          %v1488 = vadd.f32 %v1371, %v1438
          %v1489 = vadd.f32 %v1374, %v1438
          %v1490 = vadd.f32 %v1379, %v1438
          %v1491 = vadd.f32 %v1382, %v1438
          %v1492 = vadd.f32 %v1387, %v1438
          %v1493 = vadd.f32 %v1390, %v1438
          %v1494 = vadd.f32 %v1395, %v1438
          %v1495 = vadd.f32 %v1398, %v1438
          %v1496 = vadd.f32 %v1403, %v1438
          %v1497 = vadd.f32 %v1406, %v1438
          %v1498 = vadd.f32 %v1411, %v1438
          %v1499 = vadd.f32 %v1414, %v1438
          %v1500 = vadd.f32 %v1419, %v1438
          %v1501 = vadd.f32 %v1422, %v1438
          %v1502 = vadd.f32 %v1427, %v1438
          %v1503 = vadd.f32 %v1430, %v1438
          %v1504 = vmax.f32 %v1440, 0.0
          %v1505 = vmax.f32 %v1441, 0.0
          %v1506 = vmax.f32 %v1442, 0.0
          %v1507 = vmax.f32 %v1443, 0.0
          %v1508 = vmax.f32 %v1444, 0.0
          %v1509 = vmax.f32 %v1445, 0.0
          %v1510 = vmax.f32 %v1446, 0.0
          %v1511 = vmax.f32 %v1447, 0.0
          %v1512 = vmax.f32 %v1448, 0.0
          %v1513 = vmax.f32 %v1449, 0.0
          %v1514 = vmax.f32 %v1450, 0.0
          %v1515 = vmax.f32 %v1451, 0.0
          %v1516 = vmax.f32 %v1452, 0.0
          %v1517 = vmax.f32 %v1453, 0.0
          %v1518 = vmax.f32 %v1454, 0.0
          %v1519 = vmax.f32 %v1455, 0.0
          %v1520 = vmax.f32 %v1456, 0.0
          %v1521 = vmax.f32 %v1457, 0.0
          %v1522 = vmax.f32 %v1458, 0.0
          %v1523 = vmax.f32 %v1459, 0.0
          %v1524 = vmax.f32 %v1460, 0.0
          %v1525 = vmax.f32 %v1461, 0.0
          %v1526 = vmax.f32 %v1462, 0.0
          %v1527 = vmax.f32 %v1463, 0.0
          %v1528 = vmax.f32 %v1464, 0.0
          %v1529 = vmax.f32 %v1465, 0.0
          %v1530 = vmax.f32 %v1466, 0.0
          %v1531 = vmax.f32 %v1467, 0.0
          %v1532 = vmax.f32 %v1468, 0.0
          %v1533 = vmax.f32 %v1469, 0.0
          %v1534 = vmax.f32 %v1470, 0.0
          %v1535 = vmax.f32 %v1471, 0.0
          %v1536 = vmax.f32 %v1472, 0.0
          %v1537 = vmax.f32 %v1473, 0.0
          %v1538 = vmax.f32 %v1474, 0.0
          %v1539 = vmax.f32 %v1475, 0.0
          %v1540 = vmax.f32 %v1476, 0.0
          %v1541 = vmax.f32 %v1477, 0.0
          %v1542 = vmax.f32 %v1478, 0.0
          %v1543 = vmax.f32 %v1479, 0.0
          %v1544 = vmax.f32 %v1480, 0.0
          %v1545 = vmax.f32 %v1481, 0.0
          %v1546 = vmax.f32 %v1482, 0.0
          %v1547 = vmax.f32 %v1483, 0.0
          %v1548 = vmax.f32 %v1484, 0.0
          %v1549 = vmax.f32 %v1485, 0.0
          %v1550 = vmax.f32 %v1486, 0.0
          %v1551 = vmax.f32 %v1487, 0.0
          %v1552 = vmax.f32 %v1488, 0.0
          %v1553 = vmax.f32 %v1489, 0.0
          %v1554 = vmax.f32 %v1490, 0.0
          %v1555 = vmax.f32 %v1491, 0.0
          %v1556 = vmax.f32 %v1492, 0.0
          %v1557 = vmax.f32 %v1493, 0.0
          %v1558 = vmax.f32 %v1494, 0.0
          %v1559 = vmax.f32 %v1495, 0.0
          %v1560 = vmax.f32 %v1496, 0.0
          %v1561 = vmax.f32 %v1497, 0.0
          %v1562 = vmax.f32 %v1498, 0.0
          %v1563 = vmax.f32 %v1499, 0.0
          %v1564 = vmax.f32 %v1500, 0.0
          %v1565 = vmax.f32 %v1501, 0.0
          %v1566 = vmax.f32 %v1502, 0.0
          %v1567 = vmax.f32 %v1503, 0.0
          %v1568 = vld [vmem:[#allocation3] sm:$0x1]
          %v1569 = vadd.f32 %v1504, %v1505
          %v1570 = vadd.f32 %v1569, %v1506
          %v1571 = vadd.f32 %v1570, %v1507
          %v1572 = vadd.f32 %v1571, %v1508
          %v1573 = vadd.f32 %v1572, %v1509
          %v1574 = vadd.f32 %v1573, %v1510
          %v1575 = vadd.f32 %v1574, %v1511
          %v1576 = vadd.f32 %v1575, %v1512
          %v1577 = vadd.f32 %v1576, %v1513
          %v1578 = vadd.f32 %v1577, %v1514
          %v1579 = vadd.f32 %v1578, %v1515
          %v1580 = vadd.f32 %v1579, %v1516
          %v1581 = vadd.f32 %v1580, %v1517
          %v1582 = vadd.f32 %v1581, %v1518
          %v1583 = vadd.f32 %v1582, %v1519
          %v1584 = vadd.f32 %v1583, %v1520
          %v1585 = vadd.f32 %v1584, %v1521
          %v1586 = vadd.f32 %v1585, %v1522
          %v1587 = vadd.f32 %v1586, %v1523
          %v1588 = vadd.f32 %v1587, %v1524
          %v1589 = vadd.f32 %v1588, %v1525
          %v1590 = vadd.f32 %v1589, %v1526
          %v1591 = vadd.f32 %v1590, %v1527
          %v1592 = vadd.f32 %v1591, %v1528
          %v1593 = vadd.f32 %v1592, %v1529
          %v1594 = vadd.f32 %v1593, %v1530
          %v1595 = vadd.f32 %v1594, %v1531
          %v1596 = vadd.f32 %v1595, %v1532
          %v1597 = vadd.f32 %v1596, %v1533
          %v1598 = vadd.f32 %v1597, %v1534
          %v1599 = vadd.f32 %v1598, %v1535
          %v1600 = vadd.f32 %v1599, %v1536
          %v1601 = vadd.f32 %v1600, %v1537
          %v1602 = vadd.f32 %v1601, %v1538
          %v1603 = vadd.f32 %v1602, %v1539
          %v1604 = vadd.f32 %v1603, %v1540
          %v1605 = vadd.f32 %v1604, %v1541
          %v1606 = vadd.f32 %v1605, %v1542
          %v1607 = vadd.f32 %v1606, %v1543
          %v1608 = vadd.f32 %v1607, %v1544
          %v1609 = vadd.f32 %v1608, %v1545
          %v1610 = vadd.f32 %v1609, %v1546
          %v1611 = vadd.f32 %v1610, %v1547
          %v1612 = vadd.f32 %v1611, %v1548
          %v1613 = vadd.f32 %v1612, %v1549
          %v1614 = vadd.f32 %v1613, %v1550
          %v1615 = vadd.f32 %v1614, %v1551
          %v1616 = vadd.f32 %v1615, %v1552
          %v1617 = vadd.f32 %v1616, %v1553
          %v1618 = vadd.f32 %v1617, %v1554
          %v1619 = vadd.f32 %v1618, %v1555
          %v1620 = vadd.f32 %v1619, %v1556
          %v1621 = vadd.f32 %v1620, %v1557
          %v1622 = vadd.f32 %v1621, %v1558
          %v1623 = vadd.f32 %v1622, %v1559
          %v1624 = vadd.f32 %v1623, %v1560
          %v1625 = vadd.f32 %v1624, %v1561
          %v1626 = vadd.f32 %v1625, %v1562
          %v1627 = vadd.f32 %v1626, %v1563
          %v1628 = vadd.f32 %v1627, %v1564
          %v1629 = vadd.f32 %v1628, %v1565
          %v1630 = vadd.f32 %v1629, %v1566
          %v1631 = vadd.f32 %v1630, %v1567
          %v1632 = vrot.slane %v1631, 4
          %v1633 = vadd.f32 %v1631, %v1632
          %v1634 = vrot.slane %v1633, 2
          %v1635 = vadd.f32 %v1633, %v1634
          %v1636 = vrot.slane %v1635, 1
          %v1637 = vadd.f32 %v1635, %v1636
          %v1638 = vadd.f32 %v1568, %v1637
          %1639 = vst [vmem:[#allocation3] sm:$0x1] %v1638
          %s1640 = smul.u32 %s28, 512
          %s1641 = scalar_lea.vmem [#allocation2], %s1640
          %1642 = vst [vmem:[%s1641] sm:$0xff] %v1504
          %1643 = vst [vmem:[%s1641 + $0x8] sm:$0xff] %v1505
          %1644 = vst [vmem:[%s1641 + $0x10] sm:$0xff] %v1506
          %1645 = vst [vmem:[%s1641 + $0x18] sm:$0xff] %v1507
          %1646 = vst [vmem:[%s1641 + $0x20] sm:$0xff] %v1508
          %1647 = vst [vmem:[%s1641 + $0x28] sm:$0xff] %v1509
          %1648 = vst [vmem:[%s1641 + $0x30] sm:$0xff] %v1510
          %1649 = vst [vmem:[%s1641 + $0x38] sm:$0xff] %v1511
          %1650 = vst [vmem:[%s1641 + $0x40] sm:$0xff] %v1512
          %1651 = vst [vmem:[%s1641 + $0x48] sm:$0xff] %v1513
          %1652 = vst [vmem:[%s1641 + $0x50] sm:$0xff] %v1514
          %1653 = vst [vmem:[%s1641 + $0x58] sm:$0xff] %v1515
          %1654 = vst [vmem:[%s1641 + $0x60] sm:$0xff] %v1516
          %1655 = vst [vmem:[%s1641 + $0x68] sm:$0xff] %v1517
          %1656 = vst [vmem:[%s1641 + $0x70] sm:$0xff] %v1518
          %1657 = vst [vmem:[%s1641 + $0x78] sm:$0xff] %v1519
          %1658 = vst [vmem:[%s1641 + $0x80] sm:$0xff] %v1520
          %1659 = vst [vmem:[%s1641 + $0x88] sm:$0xff] %v1521
          %1660 = vst [vmem:[%s1641 + $0x90] sm:$0xff] %v1522
          %1661 = vst [vmem:[%s1641 + $0x98] sm:$0xff] %v1523
          %1662 = vst [vmem:[%s1641 + $0xa0] sm:$0xff] %v1524
          %1663 = vst [vmem:[%s1641 + $0xa8] sm:$0xff] %v1525
          %1664 = vst [vmem:[%s1641 + $0xb0] sm:$0xff] %v1526
          %1665 = vst [vmem:[%s1641 + $0xb8] sm:$0xff] %v1527
          %1666 = vst [vmem:[%s1641 + $0xc0] sm:$0xff] %v1528
          %1667 = vst [vmem:[%s1641 + $0xc8] sm:$0xff] %v1529
          %1668 = vst [vmem:[%s1641 + $0xd0] sm:$0xff] %v1530
          %1669 = vst [vmem:[%s1641 + $0xd8] sm:$0xff] %v1531
          %1670 = vst [vmem:[%s1641 + $0xe0] sm:$0xff] %v1532
          %1671 = vst [vmem:[%s1641 + $0xe8] sm:$0xff] %v1533
          %1672 = vst [vmem:[%s1641 + $0xf0] sm:$0xff] %v1534
          %1673 = vst [vmem:[%s1641 + $0xf8] sm:$0xff] %v1535
          %1674 = vst [vmem:[%s1641 + $0x100] sm:$0xff] %v1536
          %1675 = vst [vmem:[%s1641 + $0x108] sm:$0xff] %v1537
          %1676 = vst [vmem:[%s1641 + $0x110] sm:$0xff] %v1538
          %1677 = vst [vmem:[%s1641 + $0x118] sm:$0xff] %v1539
          %1678 = vst [vmem:[%s1641 + $0x120] sm:$0xff] %v1540
          %1679 = vst [vmem:[%s1641 + $0x128] sm:$0xff] %v1541
          %1680 = vst [vmem:[%s1641 + $0x130] sm:$0xff] %v1542
          %1681 = vst [vmem:[%s1641 + $0x138] sm:$0xff] %v1543
          %1682 = vst [vmem:[%s1641 + $0x140] sm:$0xff] %v1544
          %1683 = vst [vmem:[%s1641 + $0x148] sm:$0xff] %v1545
          %1684 = vst [vmem:[%s1641 + $0x150] sm:$0xff] %v1546
          %1685 = vst [vmem:[%s1641 + $0x158] sm:$0xff] %v1547
          %1686 = vst [vmem:[%s1641 + $0x160] sm:$0xff] %v1548
          %1687 = vst [vmem:[%s1641 + $0x168] sm:$0xff] %v1549
          %1688 = vst [vmem:[%s1641 + $0x170] sm:$0xff] %v1550
          %1689 = vst [vmem:[%s1641 + $0x178] sm:$0xff] %v1551
          %1690 = vst [vmem:[%s1641 + $0x180] sm:$0xff] %v1552
          %1691 = vst [vmem:[%s1641 + $0x188] sm:$0xff] %v1553
          %1692 = vst [vmem:[%s1641 + $0x190] sm:$0xff] %v1554
          %1693 = vst [vmem:[%s1641 + $0x198] sm:$0xff] %v1555
          %1694 = vst [vmem:[%s1641 + $0x1a0] sm:$0xff] %v1556
          %1695 = vst [vmem:[%s1641 + $0x1a8] sm:$0xff] %v1557
          %1696 = vst [vmem:[%s1641 + $0x1b0] sm:$0xff] %v1558
          %1697 = vst [vmem:[%s1641 + $0x1b8] sm:$0xff] %v1559
          %1698 = vst [vmem:[%s1641 + $0x1c0] sm:$0xff] %v1560
          %1699 = vst [vmem:[%s1641 + $0x1c8] sm:$0xff] %v1561
          %1700 = vst [vmem:[%s1641 + $0x1d0] sm:$0xff] %v1562
          %1701 = vst [vmem:[%s1641 + $0x1d8] sm:$0xff] %v1563
          %1702 = vst [vmem:[%s1641 + $0x1e0] sm:$0xff] %v1564
          %1703 = vst [vmem:[%s1641 + $0x1e8] sm:$0xff] %v1565
          %1704 = vst [vmem:[%s1641 + $0x1f0] sm:$0xff] %v1566
          %1705 = vst [vmem:[%s1641 + $0x1f8] sm:$0xff] %v1567
          %p1706 = scmp.eq.s32.totalorder %s28, 1
          // Predicated region
          $region57: #{tpu_custom_call.1} parent=51 // pred_check
            %p1707 = pneg %p1706
          $region58: #{tpu_custom_call.1} parent=51 // pred_check_branch
            %1709 = sbr.rel (%p1707) target = $region60
          $region59: #{tpu_custom_call.1} parent=51 // pred_region
            %v1710 = vld [vmem:[#allocation3] sm:$0x1]
            %v1711 = vmul.f32 %v1710, 0.0009765625
            %v1712 = vld [vmem:[%s5] sm:$0xff]
            %v1713 = vld [vmem:[%s5 + $0x8] sm:$0xff]
            %v1714 = vld [vmem:[%s5 + $0x10] sm:$0xff]
            %v1715 = vld [vmem:[%s5 + $0x18] sm:$0xff]
            %v1716 = vld [vmem:[%s5 + $0x20] sm:$0xff]
            %v1717 = vld [vmem:[%s5 + $0x28] sm:$0xff]
            %v1718 = vld [vmem:[%s5 + $0x30] sm:$0xff]
            %v1719 = vld [vmem:[%s5 + $0x38] sm:$0xff]
            %v1720 = vld [vmem:[%s5 + $0x40] sm:$0xff]
            %v1721 = vld [vmem:[%s5 + $0x48] sm:$0xff]
            %v1722 = vld [vmem:[%s5 + $0x50] sm:$0xff]
            %v1723 = vld [vmem:[%s5 + $0x58] sm:$0xff]
            %v1724 = vld [vmem:[%s5 + $0x60] sm:$0xff]
            %v1725 = vld [vmem:[%s5 + $0x68] sm:$0xff]
            %v1726 = vld [vmem:[%s5 + $0x70] sm:$0xff]
            %v1727 = vld [vmem:[%s5 + $0x78] sm:$0xff]
            %1728 = vmatprep.subr.mxu0 0.0
            %1729 = vmatpush1.msra.mxu0 %v1727
            %1730 = vmatprep.subr.mxu0 0.0
            %1731 = vmatpush1.msra.mxu0 %v1726
            %1732 = vmatprep.subr.mxu0 0.0
            %1733 = vmatpush1.msra.mxu0 %v1725
            %1734 = vmatprep.subr.mxu0 0.0
            %1735 = vmatpush1.msra.mxu0 %v1724
            %1736 = vmatprep.subr.mxu0 0.0
            %1737 = vmatpush1.msra.mxu0 %v1723
            %1738 = vmatprep.subr.mxu0 0.0
            %1739 = vmatpush1.msra.mxu0 %v1722
            %1740 = vmatprep.subr.mxu0 0.0
            %1741 = vmatpush1.msra.mxu0 %v1721
            %1742 = vmatprep.subr.mxu0 0.0
            %1743 = vmatpush1.msra.mxu0 %v1720
            %1744 = vmatprep.subr.mxu0 0.0
            %1745 = vmatpush1.msra.mxu0 %v1719
            %1746 = vmatprep.subr.mxu0 0.0
            %1747 = vmatpush1.msra.mxu0 %v1718
            %1748 = vmatprep.subr.mxu0 0.0
            %1749 = vmatpush1.msra.mxu0 %v1717
            %1750 = vmatprep.subr.mxu0 0.0
            %1751 = vmatpush1.msra.mxu0 %v1716
            %1752 = vmatprep.subr.mxu0 0.0
            %1753 = vmatpush1.msra.mxu0 %v1715
            %1754 = vmatprep.subr.mxu0 0.0
            %1755 = vmatpush1.msra.mxu0 %v1714
            %1756 = vmatprep.subr.mxu0 0.0
            %1757 = vmatpush1.msra.mxu0 %v1713
            %1758 = vmatprep.subr.mxu0 0.0
            %1759 = vmatpush1.msra.mxu0 %v1712
            %1760 = vmatprep.subr.mxu0 0.0
            %1761 = vmatpush2.msra.mxu0 0.0
            %1762 = vmatprep.subr.mxu0 0.0
            %1763 = vmatpush2.msra.mxu0 0.0
            %1764 = vmatprep.subr.mxu0 0.0
            %1765 = vmatpush2.msra.mxu0 0.0
            %1766 = vmatprep.subr.mxu0 0.0
            %1767 = vmatpush2.msra.mxu0 0.0
            %1768 = vmatprep.subr.mxu0 0.0
            %1769 = vmatpush2.msra.mxu0 0.0
            %1770 = vmatprep.subr.mxu0 0.0
            %1771 = vmatpush2.msra.mxu0 0.0
            %1772 = vmatprep.subr.mxu0 0.0
            %1773 = vmatpush2.msra.mxu0 0.0
            %1774 = vmatprep.subr.mxu0 0.0
            %1775 = vmatpush2.msra.mxu0 0.0
            %1776 = vmatprep.subr.mxu0 0.0
            %1777 = vmatpush2.msra.mxu0 0.0
            %1778 = vmatprep.subr.mxu0 0.0
            %1779 = vmatpush2.msra.mxu0 0.0
            %1780 = vmatprep.subr.mxu0 0.0
            %1781 = vmatpush2.msra.mxu0 0.0
            %1782 = vmatprep.subr.mxu0 0.0
            %1783 = vmatpush2.msra.mxu0 0.0
            %1784 = vmatprep.subr.mxu0 0.0
            %1785 = vmatpush2.msra.mxu0 0.0
            %1786 = vmatprep.subr.mxu0 0.0
            %1787 = vmatpush2.msra.mxu0 0.0
            %1788 = vmatprep.subr.mxu0 0.0
            %1789 = vmatpush2.msra.mxu0 0.0
            %1790 = vmatprep.subr.mxu0 0.0
            %1791 = vmatpush2.msra.mxu0 0.0
            %1792 = vmatprep.mubr.f32.mxu0 0.0
            %1793 = vmatmul.mubr.f32.gmra.mxu0 %v1711
            %v1794 = vpop.f32.mrf.mxu0
            %v1795 = vadd.f32 0.0, %v1794
            %v1796 = vpop.f32.mrf.mxu0
            %1797 = vdwg.mxu0
            %v1798 = vmax.f32 %v1795, 0.0
            %v1799 = vld [vmem:[%s6] sm:$0xff]
            %v1800 = vld [vmem:[%s6 + $0x8] sm:$0xff]
            %v1801 = vld [vmem:[%s6 + $0x10] sm:$0xff]
            %v1802 = vld [vmem:[%s6 + $0x18] sm:$0xff]
            %vm1803 = vcmask 261120
            %v1805 = vsel %vm1803, %v1798, 0
            %1807 = vmatprep.subr.mxu0 0.0
            %1808 = vmatpush1.msra.mxu0 0.0
            %1809 = vmatprep.subr.mxu0 0.0
            %1810 = vmatpush1.msra.mxu0 0.0
            %1811 = vmatprep.subr.mxu0 0.0
            %1812 = vmatpush1.msra.mxu0 0.0
            %1813 = vmatprep.subr.mxu0 0.0
            %1814 = vmatpush1.msra.mxu0 0.0
            %1815 = vmatprep.subr.mxu0 0.0
            %1816 = vmatpush1.msra.mxu0 0.0
            %1817 = vmatprep.subr.mxu0 0.0
            %1818 = vmatpush1.msra.mxu0 0.0
            %1819 = vmatprep.subr.mxu0 0.0
            %1820 = vmatpush1.msra.mxu0 0.0
            %1821 = vmatprep.subr.mxu0 0.0
            %1822 = vmatpush1.msra.mxu0 0.0
            %1823 = vmatprep.subr.mxu0 0.0
            %1824 = vmatpush1.msra.mxu0 0.0
            %1825 = vmatprep.subr.mxu0 0.0
            %1826 = vmatpush1.msra.mxu0 0.0
            %1827 = vmatprep.subr.mxu0 0.0
            %1828 = vmatpush1.msra.mxu0 0.0
            %1829 = vmatprep.subr.mxu0 0.0
            %1830 = vmatpush1.msra.mxu0 0.0
            %1831 = vmatprep.subr.mxu0 0.0
            %1832 = vmatpush1.msra.mxu0 %v1802
            %1833 = vmatprep.subr.mxu0 0.0
            %1834 = vmatpush1.msra.mxu0 %v1801
            %1835 = vmatprep.subr.mxu0 0.0
            %1836 = vmatpush1.msra.mxu0 %v1800
            %1837 = vmatprep.subr.mxu0 0.0
            %1838 = vmatpush1.msra.mxu0 %v1799
            %1839 = vmatprep.subr.mxu0 0.0
            %1840 = vmatpush2.msra.mxu0 0.0
            %1841 = vmatprep.subr.mxu0 0.0
            %1842 = vmatpush2.msra.mxu0 0.0
            %1843 = vmatprep.subr.mxu0 0.0
            %1844 = vmatpush2.msra.mxu0 0.0
            %1845 = vmatprep.subr.mxu0 0.0
            %1846 = vmatpush2.msra.mxu0 0.0
            %1847 = vmatprep.subr.mxu0 0.0
            %1848 = vmatpush2.msra.mxu0 0.0
            %1849 = vmatprep.subr.mxu0 0.0
            %1850 = vmatpush2.msra.mxu0 0.0
            %1851 = vmatprep.subr.mxu0 0.0
            %1852 = vmatpush2.msra.mxu0 0.0
            %1853 = vmatprep.subr.mxu0 0.0
            %1854 = vmatpush2.msra.mxu0 0.0
            %1855 = vmatprep.subr.mxu0 0.0
            %1856 = vmatpush2.msra.mxu0 0.0
            %1857 = vmatprep.subr.mxu0 0.0
            %1858 = vmatpush2.msra.mxu0 0.0
            %1859 = vmatprep.subr.mxu0 0.0
            %1860 = vmatpush2.msra.mxu0 0.0
            %1861 = vmatprep.subr.mxu0 0.0
            %1862 = vmatpush2.msra.mxu0 0.0
            %1863 = vmatprep.subr.mxu0 0.0
            %1864 = vmatpush2.msra.mxu0 0.0
            %1865 = vmatprep.subr.mxu0 0.0
            %1866 = vmatpush2.msra.mxu0 0.0
            %1867 = vmatprep.subr.mxu0 0.0
            %1868 = vmatpush2.msra.mxu0 0.0
            %1869 = vmatprep.subr.mxu0 0.0
            %1870 = vmatpush2.msra.mxu0 0.0
            %1871 = vmatprep.mubr.f32.mxu0 0.0
            %1872 = vmatmul.mubr.f32.gmra.mxu0 %v1805
            %v1873 = vpop.f32.mrf.mxu0
            %v1874 = vadd.f32 0.0, %v1873
            %v1875 = vpop.f32.mrf.mxu0
            %1876 = vdwg.mxu0
            %v1877 = vxor.u32 %v1874, 2147483648
            %v1878 = vmul.f32 %v1877, 1.442695
            %v1879 = vpow.pop %v1878
            %v1880 = vadd.f32 %v1879, 1.0
            %v1881 = vrcp.pop %v1880
            %v1882 = vmul.f32 1.0, %v1881
            %v1883 = vadd.f32 %v1882, 1.0
            %1884 = vst [vmem:[#allocation4] sm:$0x1] %v1883
          $region60: #{tpu_custom_call.1} parent=51 // pred_fallthru
            _
        $region52: #{tpu_custom_call.1} parent=47 // pred_fallthru
          _
        %p1885 = scmp.eq.s32.totalorder %s27, 1
        // Predicated region
        $region61: #{tpu_custom_call.1} parent=47 // pred_check
          %p1886 = pneg %p1885
        $region62: #{tpu_custom_call.1} parent=47 // pred_check_branch
          %1888 = sbr.rel (%p1886) target = $region64
        $region63: #{tpu_custom_call.1} parent=47 // pred_region
          %s1889 = smul.u32 %s28, 512
          %s1890 = scalar_lea.vmem [#allocation2], %s1889
          %v1891 = vld [vmem:[%s1890] sm:$0xff]
          %v1892 = vld [vmem:[%s1890 + $0x8] sm:$0xff]
          %v1893 = vld [vmem:[%s1890 + $0x10] sm:$0xff]
          %v1894 = vld [vmem:[%s1890 + $0x18] sm:$0xff]
          %v1895 = vld [vmem:[%s1890 + $0x20] sm:$0xff]
          %v1896 = vld [vmem:[%s1890 + $0x28] sm:$0xff]
          %v1897 = vld [vmem:[%s1890 + $0x30] sm:$0xff]
          %v1898 = vld [vmem:[%s1890 + $0x38] sm:$0xff]
          %v1899 = vld [vmem:[%s1890 + $0x40] sm:$0xff]
          %v1900 = vld [vmem:[%s1890 + $0x48] sm:$0xff]
          %v1901 = vld [vmem:[%s1890 + $0x50] sm:$0xff]
          %v1902 = vld [vmem:[%s1890 + $0x58] sm:$0xff]
          %v1903 = vld [vmem:[%s1890 + $0x60] sm:$0xff]
          %v1904 = vld [vmem:[%s1890 + $0x68] sm:$0xff]
          %v1905 = vld [vmem:[%s1890 + $0x70] sm:$0xff]
          %v1906 = vld [vmem:[%s1890 + $0x78] sm:$0xff]
          %v1907 = vld [vmem:[%s1890 + $0x80] sm:$0xff]
          %v1908 = vld [vmem:[%s1890 + $0x88] sm:$0xff]
          %v1909 = vld [vmem:[%s1890 + $0x90] sm:$0xff]
          %v1910 = vld [vmem:[%s1890 + $0x98] sm:$0xff]
          %v1911 = vld [vmem:[%s1890 + $0xa0] sm:$0xff]
          %v1912 = vld [vmem:[%s1890 + $0xa8] sm:$0xff]
          %v1913 = vld [vmem:[%s1890 + $0xb0] sm:$0xff]
          %v1914 = vld [vmem:[%s1890 + $0xb8] sm:$0xff]
          %v1915 = vld [vmem:[%s1890 + $0xc0] sm:$0xff]
          %v1916 = vld [vmem:[%s1890 + $0xc8] sm:$0xff]
          %v1917 = vld [vmem:[%s1890 + $0xd0] sm:$0xff]
          %v1918 = vld [vmem:[%s1890 + $0xd8] sm:$0xff]
          %v1919 = vld [vmem:[%s1890 + $0xe0] sm:$0xff]
          %v1920 = vld [vmem:[%s1890 + $0xe8] sm:$0xff]
          %v1921 = vld [vmem:[%s1890 + $0xf0] sm:$0xff]
          %v1922 = vld [vmem:[%s1890 + $0xf8] sm:$0xff]
          %v1923 = vld [vmem:[%s1890 + $0x100] sm:$0xff]
          %v1924 = vld [vmem:[%s1890 + $0x108] sm:$0xff]
          %v1925 = vld [vmem:[%s1890 + $0x110] sm:$0xff]
          %v1926 = vld [vmem:[%s1890 + $0x118] sm:$0xff]
          %v1927 = vld [vmem:[%s1890 + $0x120] sm:$0xff]
          %v1928 = vld [vmem:[%s1890 + $0x128] sm:$0xff]
          %v1929 = vld [vmem:[%s1890 + $0x130] sm:$0xff]
          %v1930 = vld [vmem:[%s1890 + $0x138] sm:$0xff]
          %v1931 = vld [vmem:[%s1890 + $0x140] sm:$0xff]
          %v1932 = vld [vmem:[%s1890 + $0x148] sm:$0xff]
          %v1933 = vld [vmem:[%s1890 + $0x150] sm:$0xff]
          %v1934 = vld [vmem:[%s1890 + $0x158] sm:$0xff]
          %v1935 = vld [vmem:[%s1890 + $0x160] sm:$0xff]
          %v1936 = vld [vmem:[%s1890 + $0x168] sm:$0xff]
          %v1937 = vld [vmem:[%s1890 + $0x170] sm:$0xff]
          %v1938 = vld [vmem:[%s1890 + $0x178] sm:$0xff]
          %v1939 = vld [vmem:[%s1890 + $0x180] sm:$0xff]
          %v1940 = vld [vmem:[%s1890 + $0x188] sm:$0xff]
          %v1941 = vld [vmem:[%s1890 + $0x190] sm:$0xff]
          %v1942 = vld [vmem:[%s1890 + $0x198] sm:$0xff]
          %v1943 = vld [vmem:[%s1890 + $0x1a0] sm:$0xff]
          %v1944 = vld [vmem:[%s1890 + $0x1a8] sm:$0xff]
          %v1945 = vld [vmem:[%s1890 + $0x1b0] sm:$0xff]
          %v1946 = vld [vmem:[%s1890 + $0x1b8] sm:$0xff]
          %v1947 = vld [vmem:[%s1890 + $0x1c0] sm:$0xff]
          %v1948 = vld [vmem:[%s1890 + $0x1c8] sm:$0xff]
          %v1949 = vld [vmem:[%s1890 + $0x1d0] sm:$0xff]
          %v1950 = vld [vmem:[%s1890 + $0x1d8] sm:$0xff]
          %v1951 = vld [vmem:[%s1890 + $0x1e0] sm:$0xff]
          %v1952 = vld [vmem:[%s1890 + $0x1e8] sm:$0xff]
          %v1953 = vld [vmem:[%s1890 + $0x1f0] sm:$0xff]
          %v1954 = vld [vmem:[%s1890 + $0x1f8] sm:$0xff]
          %v1955 = vld [vmem:[#allocation4] sm:$0x1]
          %v1957 = vlaneseq
          %v1958 = vshrl.u32 %v1957, 7
          %v1959 = vsub.s32 0, %v1958
          %v1960 = vrot.slane %v1955, %v1959
          %v1962 = vmul.f32 %v1891, %v1960
          %v1963 = vmul.f32 %v1892, %v1960
          %v1964 = vmul.f32 %v1893, %v1960
          %v1965 = vmul.f32 %v1894, %v1960
          %v1966 = vmul.f32 %v1895, %v1960
          %v1967 = vmul.f32 %v1896, %v1960
          %v1968 = vmul.f32 %v1897, %v1960
          %v1969 = vmul.f32 %v1898, %v1960
          %v1970 = vmul.f32 %v1899, %v1960
          %v1971 = vmul.f32 %v1900, %v1960
          %v1972 = vmul.f32 %v1901, %v1960
          %v1973 = vmul.f32 %v1902, %v1960
          %v1974 = vmul.f32 %v1903, %v1960
          %v1975 = vmul.f32 %v1904, %v1960
          %v1976 = vmul.f32 %v1905, %v1960
          %v1977 = vmul.f32 %v1906, %v1960
          %v1978 = vmul.f32 %v1907, %v1960
          %v1979 = vmul.f32 %v1908, %v1960
          %v1980 = vmul.f32 %v1909, %v1960
          %v1981 = vmul.f32 %v1910, %v1960
          %v1982 = vmul.f32 %v1911, %v1960
          %v1983 = vmul.f32 %v1912, %v1960
          %v1984 = vmul.f32 %v1913, %v1960
          %v1985 = vmul.f32 %v1914, %v1960
          %v1986 = vmul.f32 %v1915, %v1960
          %v1987 = vmul.f32 %v1916, %v1960
          %v1988 = vmul.f32 %v1917, %v1960
          %v1989 = vmul.f32 %v1918, %v1960
          %v1990 = vmul.f32 %v1919, %v1960
          %v1991 = vmul.f32 %v1920, %v1960
          %v1992 = vmul.f32 %v1921, %v1960
          %v1993 = vmul.f32 %v1922, %v1960
          %v1994 = vmul.f32 %v1923, %v1960
          %v1995 = vmul.f32 %v1924, %v1960
          %v1996 = vmul.f32 %v1925, %v1960
          %v1997 = vmul.f32 %v1926, %v1960
          %v1998 = vmul.f32 %v1927, %v1960
          %v1999 = vmul.f32 %v1928, %v1960
          %v2000 = vmul.f32 %v1929, %v1960
          %v2001 = vmul.f32 %v1930, %v1960
          %v2002 = vmul.f32 %v1931, %v1960
          %v2003 = vmul.f32 %v1932, %v1960
          %v2004 = vmul.f32 %v1933, %v1960
          %v2005 = vmul.f32 %v1934, %v1960
          %v2006 = vmul.f32 %v1935, %v1960
          %v2007 = vmul.f32 %v1936, %v1960
          %v2008 = vmul.f32 %v1937, %v1960
          %v2009 = vmul.f32 %v1938, %v1960
          %v2010 = vmul.f32 %v1939, %v1960
          %v2011 = vmul.f32 %v1940, %v1960
          %v2012 = vmul.f32 %v1941, %v1960
          %v2013 = vmul.f32 %v1942, %v1960
          %v2014 = vmul.f32 %v1943, %v1960
          %v2015 = vmul.f32 %v1944, %v1960
          %v2016 = vmul.f32 %v1945, %v1960
          %v2017 = vmul.f32 %v1946, %v1960
          %v2018 = vmul.f32 %v1947, %v1960
          %v2019 = vmul.f32 %v1948, %v1960
          %v2020 = vmul.f32 %v1949, %v1960
          %v2021 = vmul.f32 %v1950, %v1960
          %v2022 = vmul.f32 %v1951, %v1960
          %v2023 = vmul.f32 %v1952, %v1960
          %v2024 = vmul.f32 %v1953, %v1960
          %v2025 = vmul.f32 %v1954, %v1960
          %2026 = vst [vmem:[%s361] sm:$0xff] %v1962
          %2027 = vst [vmem:[%s361 + $0x8] sm:$0xff] %v1963
          %2028 = vst [vmem:[%s361 + $0x10] sm:$0xff] %v1964
          %2029 = vst [vmem:[%s361 + $0x18] sm:$0xff] %v1965
          %2030 = vst [vmem:[%s361 + $0x20] sm:$0xff] %v1966
          %2031 = vst [vmem:[%s361 + $0x28] sm:$0xff] %v1967
          %2032 = vst [vmem:[%s361 + $0x30] sm:$0xff] %v1968
          %2033 = vst [vmem:[%s361 + $0x38] sm:$0xff] %v1969
          %2034 = vst [vmem:[%s361 + $0x40] sm:$0xff] %v1970
          %2035 = vst [vmem:[%s361 + $0x48] sm:$0xff] %v1971
          %2036 = vst [vmem:[%s361 + $0x50] sm:$0xff] %v1972
          %2037 = vst [vmem:[%s361 + $0x58] sm:$0xff] %v1973
          %2038 = vst [vmem:[%s361 + $0x60] sm:$0xff] %v1974
          %2039 = vst [vmem:[%s361 + $0x68] sm:$0xff] %v1975
          %2040 = vst [vmem:[%s361 + $0x70] sm:$0xff] %v1976
          %2041 = vst [vmem:[%s361 + $0x78] sm:$0xff] %v1977
          %2042 = vst [vmem:[%s361 + $0x80] sm:$0xff] %v1978
          %2043 = vst [vmem:[%s361 + $0x88] sm:$0xff] %v1979
          %2044 = vst [vmem:[%s361 + $0x90] sm:$0xff] %v1980
          %2045 = vst [vmem:[%s361 + $0x98] sm:$0xff] %v1981
          %2046 = vst [vmem:[%s361 + $0xa0] sm:$0xff] %v1982
          %2047 = vst [vmem:[%s361 + $0xa8] sm:$0xff] %v1983
          %2048 = vst [vmem:[%s361 + $0xb0] sm:$0xff] %v1984
          %2049 = vst [vmem:[%s361 + $0xb8] sm:$0xff] %v1985
          %2050 = vst [vmem:[%s361 + $0xc0] sm:$0xff] %v1986
          %2051 = vst [vmem:[%s361 + $0xc8] sm:$0xff] %v1987
          %2052 = vst [vmem:[%s361 + $0xd0] sm:$0xff] %v1988
          %2053 = vst [vmem:[%s361 + $0xd8] sm:$0xff] %v1989
          %2054 = vst [vmem:[%s361 + $0xe0] sm:$0xff] %v1990
          %2055 = vst [vmem:[%s361 + $0xe8] sm:$0xff] %v1991
          %2056 = vst [vmem:[%s361 + $0xf0] sm:$0xff] %v1992
          %2057 = vst [vmem:[%s361 + $0xf8] sm:$0xff] %v1993
          %2058 = vst [vmem:[%s361 + $0x100] sm:$0xff] %v1994
          %2059 = vst [vmem:[%s361 + $0x108] sm:$0xff] %v1995
          %2060 = vst [vmem:[%s361 + $0x110] sm:$0xff] %v1996
          %2061 = vst [vmem:[%s361 + $0x118] sm:$0xff] %v1997
          %2062 = vst [vmem:[%s361 + $0x120] sm:$0xff] %v1998
          %2063 = vst [vmem:[%s361 + $0x128] sm:$0xff] %v1999
          %2064 = vst [vmem:[%s361 + $0x130] sm:$0xff] %v2000
          %2065 = vst [vmem:[%s361 + $0x138] sm:$0xff] %v2001
          %2066 = vst [vmem:[%s361 + $0x140] sm:$0xff] %v2002
          %2067 = vst [vmem:[%s361 + $0x148] sm:$0xff] %v2003
          %2068 = vst [vmem:[%s361 + $0x150] sm:$0xff] %v2004
          %2069 = vst [vmem:[%s361 + $0x158] sm:$0xff] %v2005
          %2070 = vst [vmem:[%s361 + $0x160] sm:$0xff] %v2006
          %2071 = vst [vmem:[%s361 + $0x168] sm:$0xff] %v2007
          %2072 = vst [vmem:[%s361 + $0x170] sm:$0xff] %v2008
          %2073 = vst [vmem:[%s361 + $0x178] sm:$0xff] %v2009
          %2074 = vst [vmem:[%s361 + $0x180] sm:$0xff] %v2010
          %2075 = vst [vmem:[%s361 + $0x188] sm:$0xff] %v2011
          %2076 = vst [vmem:[%s361 + $0x190] sm:$0xff] %v2012
          %2077 = vst [vmem:[%s361 + $0x198] sm:$0xff] %v2013
          %2078 = vst [vmem:[%s361 + $0x1a0] sm:$0xff] %v2014
          %2079 = vst [vmem:[%s361 + $0x1a8] sm:$0xff] %v2015
          %2080 = vst [vmem:[%s361 + $0x1b0] sm:$0xff] %v2016
          %2081 = vst [vmem:[%s361 + $0x1b8] sm:$0xff] %v2017
          %2082 = vst [vmem:[%s361 + $0x1c0] sm:$0xff] %v2018
          %2083 = vst [vmem:[%s361 + $0x1c8] sm:$0xff] %v2019
          %2084 = vst [vmem:[%s361 + $0x1d0] sm:$0xff] %v2020
          %2085 = vst [vmem:[%s361 + $0x1d8] sm:$0xff] %v2021
          %2086 = vst [vmem:[%s361 + $0x1e0] sm:$0xff] %v2022
          %2087 = vst [vmem:[%s361 + $0x1e8] sm:$0xff] %v2023
          %2088 = vst [vmem:[%s361 + $0x1f0] sm:$0xff] %v2024
          %2089 = vst [vmem:[%s361 + $0x1f8] sm:$0xff] %v2025
        $region64: #{tpu_custom_call.1} parent=47 // pred_fallthru
          _
        %s2090 = sand.u32 %s225, 1
        %s2091 = scalar_lea.sflag [#allocation6], %s2090
        %s2092 = sand.u32 %s225, 1
        %s2093 = smul.addr %s2092, 512
        %s2094 = scalar_lea.vmem [#allocation5], %s2093
        // Predicated region
        $region65: #{tpu_custom_call.1} parent=47 // pred_check
          %p2095 = pneg %p235
        $region66: #{tpu_custom_call.1} parent=47 // pred_check_branch
          %2097 = sbr.rel (%p2095) target = $region68
        $region67: #{tpu_custom_call.1} parent=47 // pred_region
          %s2098 = smul.u32 %s27, %s28
          %s2099 = smul.u32 64, %s2098
          %s2101 = ssub.s32 8192, 8192
          %2102 = vsyncadd %s2091, %s2101
          %s2103 = smul.addr %s26, 128
          %s2104 = sadd.s32 %s2099, %s2103
          %s2105 = smul.addr %s2104, 128
          %s2106 = scalar_lea.hbm %s7, %s2105
          %s2107 = sshll.u32 %s2094, 4
          %s2108 = int_to_ptr.vmem [resolvable:$true] %s2107
          %2113 = dma.vmem_to_hbm [thread:$0]  %s2108, 8192, %s2106, %s2091, 128, 128, 8
        $region68: #{tpu_custom_call.1} parent=47 // pred_fallthru
          _
      $region48: #{tpu_custom_call.1} parent=5 // pred_fallthru
        _
      %p2114 = scmp.le.s32.totalorder 2, %s16
      // Predicated region
      $region69: #{tpu_custom_call.1} parent=5 // pred_check
        %p2115 = pneg %p2114
      $region70: #{tpu_custom_call.1} parent=5 // pred_check_branch
        %2117 = sbr.rel (%p2115) target = $region72
      $region71: #{tpu_custom_call.1} parent=5 // pred_region
        %s2118 = ssub.s32 %s16, 2
        // Predicated region
        $region73: #{tpu_custom_call.1} parent=71 // pred_check
          %p2119 = pneg %p241
        $region74: #{tpu_custom_call.1} parent=71 // pred_check_branch
          %2121 = sbr.rel (%p2119) target = $region76
        $region75: #{tpu_custom_call.1} parent=71 // pred_region
          %s2122 = sand.u32 %s226, 1
          %s2123 = scalar_lea.sflag [#allocation6], %s2122
          %s2124 = sand.u32 %s226, 1
          %s2125 = smul.addr %s2124, 512
          %s2126 = scalar_lea.vmem [#allocation5], %s2125
          %2127 = dma.done %s2123, 8192
        $region76: #{tpu_custom_call.1} parent=71 // pred_fallthru
          _
      $region72: #{tpu_custom_call.1} parent=5 // pred_fallthru
        _
    $region6: #{tpu_custom_call.1} parent=1 // loop_footer
      %s20 = sadd.s32 1, %s16
    $region7: #{tpu_custom_call.1} parent=1 // loop_footer_branch
      %15 = sbr.rel target = $region3
    $region8: #{tpu_custom_call.1} parent=1 // loop_exit
      _
    %2128 = vsyncpa [#allocation6], 1
    %s2129 = scalar_lea.sflag [#allocation6], 1
    %2130 = vsyncpa %s2129, 1

</llo_original>
